<compile_context>
chip_gen: v5e
topology: v5e:2x2
jax: 0.10.0
libtpu: 0.0.40
codegen_flags: <defaults>
</compile_context>

<pallas_src>
import jax
import jax.numpy as jnp
from jax.experimental import pallas as pl
from jax.experimental.pallas import tpu as pltpu

CHAR_LSTM = 50   # hidden size of the PyTorch module
H_PAD = 64       # lane-friendly padded hidden size (4*H_PAD = 256 = one MXU pass)


def char_lstm_sum_kernel(x_ref, wx_ref, wh_ref, b_ref, out_ref):
    """x_ref: (B, T, E) embeddings (batch-first, like the PyTorch module)
    wx_ref: (E, 4*Hp)   gate-stacked, zero-padded input weights
    wh_ref: (Hp, 4*Hp)  gate-stacked, zero-padded recurrent weights
    b_ref:  (1, 4*Hp)   gate-stacked, zero-padded bias (b_ih + b_hh)
    out_ref:(B, Hp)     sum over time of LSTM hidden states (h0 = c0 = 0), padded lanes 0.
    """
    B, T, E = x_ref.shape
    Hp4 = wh_ref.shape[-1]
    Hp = Hp4 // 4

    wx = wx_ref[...]            # (E, 4Hp)
    wh = wh_ref[...]            # (Hp, 4Hp)
    b = b_ref[...]              # (1, 4Hp)

    # Hoisted input projection: one big matmul for all timesteps (off the serial path).
    x_flat = x_ref[...].reshape(B * T, E)                                   # (B*T, E)
    xw = jnp.dot(x_flat, wx, preferred_element_type=jnp.float32) + b        # (B*T, 4Hp)
    xw = xw.reshape(B, T, Hp4)                                              # (B, T, 4Hp)

    h = jnp.zeros((B, Hp), jnp.float32)
    c = jnp.zeros((B, Hp), jnp.float32)
    acc = jnp.zeros((B, Hp), jnp.float32)

    # Fully unrolled recurrence (T is small & static) -> static slices, scheduler visibility.
    for t in range(T):
        pre = xw[:, t, :] + jnp.dot(h, wh, preferred_element_type=jnp.float32)  # (B, 4Hp)
        sig = jax.nn.sigmoid(pre)                       # fused i/f/o (and unused g) sigmoids
        i_g = sig[:, 0 * Hp:1 * Hp]
        f_g = sig[:, 1 * Hp:2 * Hp]
        g_g = jnp.tanh(pre[:, 2 * Hp:3 * Hp])
        o_g = sig[:, 3 * Hp:4 * Hp]
        c = f_g * c + i_g * g_g
        h = o_g * jnp.tanh(c)
        acc = acc + h

    out_ref[...] = acc


def prepare_lstm_params(wx, wh, b, h_pad=H_PAD):
    """Gate-stack along the output dim and zero-pad H -> h_pad.

    wx: (4, E, H)   wh: (4, H, H)   b: (4, 1, H)   (PyTorch gate order [i, f, g, o])
    Returns wx_p (E, 4*h_pad), wh_p (h_pad, 4*h_pad), b_p (1, 4*h_pad).
    Padded lanes have zero weights/bias, so padded hidden lanes stay exactly 0.
    """
    E, H = wx.shape[1], wx.shape[2]
    wx_p = jnp.zeros((E, 4 * h_pad), jnp.float32)
    wh_p = jnp.zeros((h_pad, 4 * h_pad), jnp.float32)
    b_p = jnp.zeros((1, 4 * h_pad), jnp.float32)
    for k in range(4):
        wx_p = wx_p.at[:, k * h_pad:k * h_pad + H].set(wx[k])
        wh_p = wh_p.at[:H, k * h_pad:k * h_pad + H].set(wh[k])
        b_p = b_p.at[:, k * h_pad:k * h_pad + H].set(b[k])
    return wx_p, wh_p, b_p


def char_embedding_forward(words, emb_table, wx_p, wh_p, b_p, hidden=CHAR_LSTM):
    """words: (B, T) int32 char ids. Returns (B, hidden) float32 = sum_t h_t."""
    # Embedding lookup is glue; dropout is identity in eval mode.
    # TODO(synk): F.dropout in training mode (stochastic p=0.5) not applied; eval semantics used.
    embeds = jnp.take(emb_table, words, axis=0).astype(jnp.float32)   # (B, T, E), batch-first
    B = embeds.shape[0]
    h_pad = wh_p.shape[0]

    out_padded = pl.pallas_call(
        char_lstm_sum_kernel,
        out_shape=jax.ShapeDtypeStruct((B, h_pad), jnp.float32),
        in_specs=[pl.BlockSpec(memory_space=pltpu.MemorySpace.VMEM)] * 4,
        out_specs=pl.BlockSpec(memory_space=pltpu.MemorySpace.VMEM),
    )(embeds, wx_p, wh_p, b_p)
    # NOTE: for realistic large batches, add a grid over B with a parallel axis
    # (dimension_semantics=("parallel",)) to use v7x's second TensorCore.
    return out_padded[:, :hidden]


def reference_forward(words, emb_table, wx, wh, b):
    """Pure-JAX reference of the same computation (unpadded, per-gate weights)."""
    x = jnp.take(emb_table, words, axis=0).astype(jnp.float32)   # (B, T, E)
    B = x.shape[0]
    H = wh.shape[-1]

    def step(carry, x_t):
        h, c = carry
        g = lambda k: x_t @ wx[k] + h @ wh[k] + b[k]
        i = jax.nn.sigmoid(g(0))
        f = jax.nn.sigmoid(g(1))
        gg = jnp.tanh(g(2))
        o = jax.nn.sigmoid(g(3))
        c = f * c + i * gg
        h = o * jnp.tanh(c)
        return (h, c), h

    init = (jnp.zeros((B, H), jnp.float32), jnp.zeros((B, H), jnp.float32))
    _, hs = jax.lax.scan(step, init, jnp.transpose(x, (1, 0, 2)))
    return hs.sum(axis=0)                                        # (B, H)


if __name__ == "__main__":
    # Small deterministic setup consistent with the module's forward:
    #   words: (batch=2, seq=8) char ids; embedding_dim=32; vocab_size=20; hidden=50.
    batch, seq, emb_dim, vocab = 2, 8, 32, 20
    H = CHAR_LSTM

    key = jax.random.PRNGKey(0)
    k_emb, k_wx, k_wh, k_bih, k_bhh, k_words = jax.random.split(key, 6)

    # nn.Embedding init ~ N(0,1); nn.LSTM init ~ U(-1/sqrt(H), 1/sqrt(H)).
    emb_table = jax.random.normal(k_emb, (vocab, emb_dim), dtype=jnp.float32)
    scale = 1.0 / jnp.sqrt(jnp.float32(H))
    wx = jax.random.uniform(k_wx, (4, emb_dim, H), minval=-scale, maxval=scale,
                            dtype=jnp.float32)
    wh = jax.random.uniform(k_wh, (4, H, H), minval=-scale, maxval=scale,
                            dtype=jnp.float32)
    b_ih = jax.random.uniform(k_bih, (4, 1, H), minval=-scale, maxval=scale,
                              dtype=jnp.float32)
    b_hh = jax.random.uniform(k_bhh, (4, 1, H), minval=-scale, maxval=scale,
                              dtype=jnp.float32)
    b = b_ih + b_hh  # PyTorch LSTM adds both biases

    words = jax.random.randint(k_words, (batch, seq), 0, vocab, dtype=jnp.int32)

    wx_p, wh_p, b_p = prepare_lstm_params(wx, wh, b)

    out = char_embedding_forward(words, emb_table, wx_p, wh_p, b_p)
    out = jax.block_until_ready(out)

    ref = jax.block_until_ready(reference_forward(words, emb_table, wx, wh, b))
    assert out.shape == (batch, H), out.shape
    assert jnp.allclose(out, ref, atol=1e-5, rtol=1e-5), (
        f"max err {jnp.max(jnp.abs(out - ref))}")

    print("KERNEL_OK")
</pallas_src>

<mosaic_0001>
module attributes {stable_mosaic.version = 11 : i64} {
  func.func @char_lstm_sum_kernel(%arg0: memref<2x8x32xf32, #tpu.memory_space<vmem>>, %arg1: memref<32x256xf32, #tpu.memory_space<vmem>>, %arg2: memref<64x256xf32, #tpu.memory_space<vmem>>, %arg3: memref<1x256xf32, #tpu.memory_space<vmem>>, %arg4: memref<2x64xf32, #tpu.memory_space<vmem>>) attributes {dimension_semantics = [], scalar_prefetch = 0 : i64, scratch_operands = 0 : i64, tpu.core_type = #tpu.core_type<tc>} {
    %c0 = arith.constant 0 : index
    %c0_0 = arith.constant 0 : index
    %0 = vector.load %arg1[%c0, %c0_0] : memref<32x256xf32, #tpu.memory_space<vmem>>, vector<32x256xf32>
    %c0_1 = arith.constant 0 : index
    %c0_2 = arith.constant 0 : index
    %1 = vector.load %arg2[%c0_1, %c0_2] : memref<64x256xf32, #tpu.memory_space<vmem>>, vector<64x256xf32>
    %c0_3 = arith.constant 0 : index
    %c0_4 = arith.constant 0 : index
    %2 = vector.load %arg3[%c0_3, %c0_4] : memref<1x256xf32, #tpu.memory_space<vmem>>, vector<1x256xf32>
    %c0_5 = arith.constant 0 : index
    %c0_6 = arith.constant 0 : index
    %c0_7 = arith.constant 0 : index
    %3 = vector.load %arg0[%c0_5, %c0_6, %c0_7] : memref<2x8x32xf32, #tpu.memory_space<vmem>>, vector<2x8x32xf32>
    %4 = vector.shape_cast %3 : vector<2x8x32xf32> to vector<16x32xf32>
    %cst = arith.constant dense<0.000000e+00> : vector<16x256xf32>
    %5 = tpu.matmul %4, %0, %cst {dimension_numbers = #tpu.dot_dimension_numbers<[1], [0], [0], [1], [0, 0, 1, 1], [], []>} : vector<16x32xf32>, vector<32x256xf32>, vector<16x256xf32> -> vector<16x256xf32>
    %6 = vector.broadcast %2 : vector<1x256xf32> to vector<16x256xf32>
    %7 = arith.addf %5, %6 : vector<16x256xf32>
    %8 = vector.shape_cast %7 : vector<16x256xf32> to vector<2x8x256xf32>
    %cst_8 = arith.constant 0.000000e+00 : f32
    %9 = vector.broadcast %cst_8 : f32 to vector<2x64xf32>
    %cst_9 = arith.constant 0.000000e+00 : f32
    %10 = vector.broadcast %cst_9 : f32 to vector<2x64xf32>
    %cst_10 = arith.constant 0.000000e+00 : f32
    %11 = vector.broadcast %cst_10 : f32 to vector<2x64xf32>
    %12 = vector.extract_strided_slice %8 {offsets = [0, 0, 0], sizes = [2, 1, 256], strides = [1, 1, 1]} : vector<2x8x256xf32> to vector<2x1x256xf32>
    %13 = vector.shape_cast %12 : vector<2x1x256xf32> to vector<2x256xf32>
    %cst_11 = arith.constant dense<0.000000e+00> : vector<2x256xf32>
    %14 = tpu.matmul %9, %1, %cst_11 {dimension_numbers = #tpu.dot_dimension_numbers<[1], [0], [0], [1], [0, 0, 1, 1], [], []>} : vector<2x64xf32>, vector<64x256xf32>, vector<2x256xf32> -> vector<2x256xf32>
    %15 = arith.addf %13, %14 : vector<2x256xf32>
    %16 = arith.negf %15 : vector<2x256xf32>
    %17 = math.exp %16 : vector<2x256xf32>
    %cst_12 = arith.constant 1.000000e+00 : f32
    %18 = vector.broadcast %cst_12 : f32 to vector<2x256xf32>
    %19 = arith.addf %18, %17 : vector<2x256xf32>
    %20 = arith.divf %18, %19 : vector<2x256xf32>
    %21 = vector.extract_strided_slice %20 {offsets = [0, 0], sizes = [2, 64], strides = [1, 1]} : vector<2x256xf32> to vector<2x64xf32>
    %22 = vector.extract_strided_slice %20 {offsets = [0, 64], sizes = [2, 64], strides = [1, 1]} : vector<2x256xf32> to vector<2x64xf32>
    %23 = vector.extract_strided_slice %15 {offsets = [0, 128], sizes = [2, 64], strides = [1, 1]} : vector<2x256xf32> to vector<2x64xf32>
    %24 = math.tanh %23 : vector<2x64xf32>
    %25 = vector.extract_strided_slice %20 {offsets = [0, 192], sizes = [2, 64], strides = [1, 1]} : vector<2x256xf32> to vector<2x64xf32>
    %26 = arith.mulf %22, %10 : vector<2x64xf32>
    %27 = arith.mulf %21, %24 : vector<2x64xf32>
    %28 = arith.addf %26, %27 : vector<2x64xf32>
    %29 = math.tanh %28 : vector<2x64xf32>
    %30 = arith.mulf %25, %29 : vector<2x64xf32>
    %31 = arith.addf %11, %30 : vector<2x64xf32>
    %32 = vector.extract_strided_slice %8 {offsets = [0, 1, 0], sizes = [2, 1, 256], strides = [1, 1, 1]} : vector<2x8x256xf32> to vector<2x1x256xf32>
    %33 = vector.shape_cast %32 : vector<2x1x256xf32> to vector<2x256xf32>
    %cst_13 = arith.constant dense<0.000000e+00> : vector<2x256xf32>
    %34 = tpu.matmul %30, %1, %cst_13 {dimension_numbers = #tpu.dot_dimension_numbers<[1], [0], [0], [1], [0, 0, 1, 1], [], []>} : vector<2x64xf32>, vector<64x256xf32>, vector<2x256xf32> -> vector<2x256xf32>
    %35 = arith.addf %33, %34 : vector<2x256xf32>
    %36 = arith.negf %35 : vector<2x256xf32>
    %37 = math.exp %36 : vector<2x256xf32>
    %cst_14 = arith.constant 1.000000e+00 : f32
    %38 = vector.broadcast %cst_14 : f32 to vector<2x256xf32>
    %39 = arith.addf %38, %37 : vector<2x256xf32>
    %40 = arith.divf %38, %39 : vector<2x256xf32>
    %41 = vector.extract_strided_slice %40 {offsets = [0, 0], sizes = [2, 64], strides = [1, 1]} : vector<2x256xf32> to vector<2x64xf32>
    %42 = vector.extract_strided_slice %40 {offsets = [0, 64], sizes = [2, 64], strides = [1, 1]} : vector<2x256xf32> to vector<2x64xf32>
    %43 = vector.extract_strided_slice %35 {offsets = [0, 128], sizes = [2, 64], strides = [1, 1]} : vector<2x256xf32> to vector<2x64xf32>
    %44 = math.tanh %43 : vector<2x64xf32>
    %45 = vector.extract_strided_slice %40 {offsets = [0, 192], sizes = [2, 64], strides = [1, 1]} : vector<2x256xf32> to vector<2x64xf32>
    %46 = arith.mulf %42, %28 : vector<2x64xf32>
    %47 = arith.mulf %41, %44 : vector<2x64xf32>
    %48 = arith.addf %46, %47 : vector<2x64xf32>
    %49 = math.tanh %48 : vector<2x64xf32>
    %50 = arith.mulf %45, %49 : vector<2x64xf32>
    %51 = arith.addf %31, %50 : vector<2x64xf32>
    %52 = vector.extract_strided_slice %8 {offsets = [0, 2, 0], sizes = [2, 1, 256], strides = [1, 1, 1]} : vector<2x8x256xf32> to vector<2x1x256xf32>
    %53 = vector.shape_cast %52 : vector<2x1x256xf32> to vector<2x256xf32>
    %cst_15 = arith.constant dense<0.000000e+00> : vector<2x256xf32>
    %54 = tpu.matmul %50, %1, %cst_15 {dimension_numbers = #tpu.dot_dimension_numbers<[1], [0], [0], [1], [0, 0, 1, 1], [], []>} : vector<2x64xf32>, vector<64x256xf32>, vector<2x256xf32> -> vector<2x256xf32>
    %55 = arith.addf %53, %54 : vector<2x256xf32>
    %56 = arith.negf %55 : vector<2x256xf32>
    %57 = math.exp %56 : vector<2x256xf32>
    %cst_16 = arith.constant 1.000000e+00 : f32
    %58 = vector.broadcast %cst_16 : f32 to vector<2x256xf32>
    %59 = arith.addf %58, %57 : vector<2x256xf32>
    %60 = arith.divf %58, %59 : vector<2x256xf32>
    %61 = vector.extract_strided_slice %60 {offsets = [0, 0], sizes = [2, 64], strides = [1, 1]} : vector<2x256xf32> to vector<2x64xf32>
    %62 = vector.extract_strided_slice %60 {offsets = [0, 64], sizes = [2, 64], strides = [1, 1]} : vector<2x256xf32> to vector<2x64xf32>
    %63 = vector.extract_strided_slice %55 {offsets = [0, 128], sizes = [2, 64], strides = [1, 1]} : vector<2x256xf32> to vector<2x64xf32>
    %64 = math.tanh %63 : vector<2x64xf32>
    %65 = vector.extract_strided_slice %60 {offsets = [0, 192], sizes = [2, 64], strides = [1, 1]} : vector<2x256xf32> to vector<2x64xf32>
    %66 = arith.mulf %62, %48 : vector<2x64xf32>
    %67 = arith.mulf %61, %64 : vector<2x64xf32>
    %68 = arith.addf %66, %67 : vector<2x64xf32>
    %69 = math.tanh %68 : vector<2x64xf32>
    %70 = arith.mulf %65, %69 : vector<2x64xf32>
    %71 = arith.addf %51, %70 : vector<2x64xf32>
    %72 = vector.extract_strided_slice %8 {offsets = [0, 3, 0], sizes = [2, 1, 256], strides = [1, 1, 1]} : vector<2x8x256xf32> to vector<2x1x256xf32>
    %73 = vector.shape_cast %72 : vector<2x1x256xf32> to vector<2x256xf32>
    %cst_17 = arith.constant dense<0.000000e+00> : vector<2x256xf32>
    %74 = tpu.matmul %70, %1, %cst_17 {dimension_numbers = #tpu.dot_dimension_numbers<[1], [0], [0], [1], [0, 0, 1, 1], [], []>} : vector<2x64xf32>, vector<64x256xf32>, vector<2x256xf32> -> vector<2x256xf32>
    %75 = arith.addf %73, %74 : vector<2x256xf32>
    %76 = arith.negf %75 : vector<2x256xf32>
    %77 = math.exp %76 : vector<2x256xf32>
    %cst_18 = arith.constant 1.000000e+00 : f32
    %78 = vector.broadcast %cst_18 : f32 to vector<2x256xf32>
    %79 = arith.addf %78, %77 : vector<2x256xf32>
    %80 = arith.divf %78, %79 : vector<2x256xf32>
    %81 = vector.extract_strided_slice %80 {offsets = [0, 0], sizes = [2, 64], strides = [1, 1]} : vector<2x256xf32> to vector<2x64xf32>
    %82 = vector.extract_strided_slice %80 {offsets = [0, 64], sizes = [2, 64], strides = [1, 1]} : vector<2x256xf32> to vector<2x64xf32>
    %83 = vector.extract_strided_slice %75 {offsets = [0, 128], sizes = [2, 64], strides = [1, 1]} : vector<2x256xf32> to vector<2x64xf32>
    %84 = math.tanh %83 : vector<2x64xf32>
    %85 = vector.extract_strided_slice %80 {offsets = [0, 192], sizes = [2, 64], strides = [1, 1]} : vector<2x256xf32> to vector<2x64xf32>
    %86 = arith.mulf %82, %68 : vector<2x64xf32>
    %87 = arith.mulf %81, %84 : vector<2x64xf32>
    %88 = arith.addf %86, %87 : vector<2x64xf32>
    %89 = math.tanh %88 : vector<2x64xf32>
    %90 = arith.mulf %85, %89 : vector<2x64xf32>
    %91 = arith.addf %71, %90 : vector<2x64xf32>
    %92 = vector.extract_strided_slice %8 {offsets = [0, 4, 0], sizes = [2, 1, 256], strides = [1, 1, 1]} : vector<2x8x256xf32> to vector<2x1x256xf32>
    %93 = vector.shape_cast %92 : vector<2x1x256xf32> to vector<2x256xf32>
    %cst_19 = arith.constant dense<0.000000e+00> : vector<2x256xf32>
    %94 = tpu.matmul %90, %1, %cst_19 {dimension_numbers = #tpu.dot_dimension_numbers<[1], [0], [0], [1], [0, 0, 1, 1], [], []>} : vector<2x64xf32>, vector<64x256xf32>, vector<2x256xf32> -> vector<2x256xf32>
    %95 = arith.addf %93, %94 : vector<2x256xf32>
    %96 = arith.negf %95 : vector<2x256xf32>
    %97 = math.exp %96 : vector<2x256xf32>
    %cst_20 = arith.constant 1.000000e+00 : f32
    %98 = vector.broadcast %cst_20 : f32 to vector<2x256xf32>
    %99 = arith.addf %98, %97 : vector<2x256xf32>
    %100 = arith.divf %98, %99 : vector<2x256xf32>
    %101 = vector.extract_strided_slice %100 {offsets = [0, 0], sizes = [2, 64], strides = [1, 1]} : vector<2x256xf32> to vector<2x64xf32>
    %102 = vector.extract_strided_slice %100 {offsets = [0, 64], sizes = [2, 64], strides = [1, 1]} : vector<2x256xf32> to vector<2x64xf32>
    %103 = vector.extract_strided_slice %95 {offsets = [0, 128], sizes = [2, 64], strides = [1, 1]} : vector<2x256xf32> to vector<2x64xf32>
    %104 = math.tanh %103 : vector<2x64xf32>
    %105 = vector.extract_strided_slice %100 {offsets = [0, 192], sizes = [2, 64], strides = [1, 1]} : vector<2x256xf32> to vector<2x64xf32>
    %106 = arith.mulf %102, %88 : vector<2x64xf32>
    %107 = arith.mulf %101, %104 : vector<2x64xf32>
    %108 = arith.addf %106, %107 : vector<2x64xf32>
    %109 = math.tanh %108 : vector<2x64xf32>
    %110 = arith.mulf %105, %109 : vector<2x64xf32>
    %111 = arith.addf %91, %110 : vector<2x64xf32>
    %112 = vector.extract_strided_slice %8 {offsets = [0, 5, 0], sizes = [2, 1, 256], strides = [1, 1, 1]} : vector<2x8x256xf32> to vector<2x1x256xf32>
    %113 = vector.shape_cast %112 : vector<2x1x256xf32> to vector<2x256xf32>
    %cst_21 = arith.constant dense<0.000000e+00> : vector<2x256xf32>
    %114 = tpu.matmul %110, %1, %cst_21 {dimension_numbers = #tpu.dot_dimension_numbers<[1], [0], [0], [1], [0, 0, 1, 1], [], []>} : vector<2x64xf32>, vector<64x256xf32>, vector<2x256xf32> -> vector<2x256xf32>
    %115 = arith.addf %113, %114 : vector<2x256xf32>
    %116 = arith.negf %115 : vector<2x256xf32>
    %117 = math.exp %116 : vector<2x256xf32>
    %cst_22 = arith.constant 1.000000e+00 : f32
    %118 = vector.broadcast %cst_22 : f32 to vector<2x256xf32>
    %119 = arith.addf %118, %117 : vector<2x256xf32>
    %120 = arith.divf %118, %119 : vector<2x256xf32>
    %121 = vector.extract_strided_slice %120 {offsets = [0, 0], sizes = [2, 64], strides = [1, 1]} : vector<2x256xf32> to vector<2x64xf32>
    %122 = vector.extract_strided_slice %120 {offsets = [0, 64], sizes = [2, 64], strides = [1, 1]} : vector<2x256xf32> to vector<2x64xf32>
    %123 = vector.extract_strided_slice %115 {offsets = [0, 128], sizes = [2, 64], strides = [1, 1]} : vector<2x256xf32> to vector<2x64xf32>
    %124 = math.tanh %123 : vector<2x64xf32>
    %125 = vector.extract_strided_slice %120 {offsets = [0, 192], sizes = [2, 64], strides = [1, 1]} : vector<2x256xf32> to vector<2x64xf32>
    %126 = arith.mulf %122, %108 : vector<2x64xf32>
    %127 = arith.mulf %121, %124 : vector<2x64xf32>
    %128 = arith.addf %126, %127 : vector<2x64xf32>
    %129 = math.tanh %128 : vector<2x64xf32>
    %130 = arith.mulf %125, %129 : vector<2x64xf32>
    %131 = arith.addf %111, %130 : vector<2x64xf32>
    %132 = vector.extract_strided_slice %8 {offsets = [0, 6, 0], sizes = [2, 1, 256], strides = [1, 1, 1]} : vector<2x8x256xf32> to vector<2x1x256xf32>
    %133 = vector.shape_cast %132 : vector<2x1x256xf32> to vector<2x256xf32>
    %cst_23 = arith.constant dense<0.000000e+00> : vector<2x256xf32>
    %134 = tpu.matmul %130, %1, %cst_23 {dimension_numbers = #tpu.dot_dimension_numbers<[1], [0], [0], [1], [0, 0, 1, 1], [], []>} : vector<2x64xf32>, vector<64x256xf32>, vector<2x256xf32> -> vector<2x256xf32>
    %135 = arith.addf %133, %134 : vector<2x256xf32>
    %136 = arith.negf %135 : vector<2x256xf32>
    %137 = math.exp %136 : vector<2x256xf32>
    %cst_24 = arith.constant 1.000000e+00 : f32
    %138 = vector.broadcast %cst_24 : f32 to vector<2x256xf32>
    %139 = arith.addf %138, %137 : vector<2x256xf32>
    %140 = arith.divf %138, %139 : vector<2x256xf32>
    %141 = vector.extract_strided_slice %140 {offsets = [0, 0], sizes = [2, 64], strides = [1, 1]} : vector<2x256xf32> to vector<2x64xf32>
    %142 = vector.extract_strided_slice %140 {offsets = [0, 64], sizes = [2, 64], strides = [1, 1]} : vector<2x256xf32> to vector<2x64xf32>
    %143 = vector.extract_strided_slice %135 {offsets = [0, 128], sizes = [2, 64], strides = [1, 1]} : vector<2x256xf32> to vector<2x64xf32>
    %144 = math.tanh %143 : vector<2x64xf32>
    %145 = vector.extract_strided_slice %140 {offsets = [0, 192], sizes = [2, 64], strides = [1, 1]} : vector<2x256xf32> to vector<2x64xf32>
    %146 = arith.mulf %142, %128 : vector<2x64xf32>
    %147 = arith.mulf %141, %144 : vector<2x64xf32>
    %148 = arith.addf %146, %147 : vector<2x64xf32>
    %149 = math.tanh %148 : vector<2x64xf32>
    %150 = arith.mulf %145, %149 : vector<2x64xf32>
    %151 = arith.addf %131, %150 : vector<2x64xf32>
    %152 = vector.extract_strided_slice %8 {offsets = [0, 7, 0], sizes = [2, 1, 256], strides = [1, 1, 1]} : vector<2x8x256xf32> to vector<2x1x256xf32>
    %153 = vector.shape_cast %152 : vector<2x1x256xf32> to vector<2x256xf32>
    %cst_25 = arith.constant dense<0.000000e+00> : vector<2x256xf32>
    %154 = tpu.matmul %150, %1, %cst_25 {dimension_numbers = #tpu.dot_dimension_numbers<[1], [0], [0], [1], [0, 0, 1, 1], [], []>} : vector<2x64xf32>, vector<64x256xf32>, vector<2x256xf32> -> vector<2x256xf32>
    %155 = arith.addf %153, %154 : vector<2x256xf32>
    %156 = arith.negf %155 : vector<2x256xf32>
    %157 = math.exp %156 : vector<2x256xf32>
    %cst_26 = arith.constant 1.000000e+00 : f32
    %158 = vector.broadcast %cst_26 : f32 to vector<2x256xf32>
    %159 = arith.addf %158, %157 : vector<2x256xf32>
    %160 = arith.divf %158, %159 : vector<2x256xf32>
    %161 = vector.extract_strided_slice %160 {offsets = [0, 0], sizes = [2, 64], strides = [1, 1]} : vector<2x256xf32> to vector<2x64xf32>
    %162 = vector.extract_strided_slice %160 {offsets = [0, 64], sizes = [2, 64], strides = [1, 1]} : vector<2x256xf32> to vector<2x64xf32>
    %163 = vector.extract_strided_slice %155 {offsets = [0, 128], sizes = [2, 64], strides = [1, 1]} : vector<2x256xf32> to vector<2x64xf32>
    %164 = math.tanh %163 : vector<2x64xf32>
    %165 = vector.extract_strided_slice %160 {offsets = [0, 192], sizes = [2, 64], strides = [1, 1]} : vector<2x256xf32> to vector<2x64xf32>
    %166 = arith.mulf %162, %148 : vector<2x64xf32>
    %167 = arith.mulf %161, %164 : vector<2x64xf32>
    %168 = arith.addf %166, %167 : vector<2x64xf32>
    %169 = math.tanh %168 : vector<2x64xf32>
    %170 = arith.mulf %165, %169 : vector<2x64xf32>
    %171 = arith.addf %151, %170 : vector<2x64xf32>
    %c0_27 = arith.constant 0 : index
    %c0_28 = arith.constant 0 : index
    %172 = vector.load %arg4[%c0_27, %c0_28] : memref<2x64xf32, #tpu.memory_space<vmem>>, vector<2x64xf32>
    tpu.vector_store %arg4[%c0_27, %c0_28], %171 {strides = array<i32>} : memref<2x64xf32, #tpu.memory_space<vmem>>, vector<2x64xf32>,
    return
  }
}

</mosaic_0001>

<llo_original>
// kernel: tpu_custom_call.1
$region0: #{tpu_custom_call.1}
  #allocation0 [shape = 'u32[]', space=smem, size = 0x4, offset = 0x4, fixed_abs, tag = 'smem constant byte address 0x4 - core index']
  #allocation1 [shape = 'u32[72,128]{1,0:T(1,128)}', space=vmem, size = 0x9000, scoped, tag = 'internal scratch']
  %s0 = inlined_call_operand.hbm [shape: f32[2,8,32], index: 0, kind: input, shape index: {}]
  %s1 = inlined_call_operand.hbm [shape: f32[32,256], index: 1, kind: input, shape index: {}]
  %s2 = inlined_call_operand.hbm [shape: f32[64,256], index: 2, kind: input, shape index: {}]
  %s3 = inlined_call_operand.vmem [shape: f32[1,256], index: 3, kind: input, shape index: {}]
  %s4 = inlined_call_operand.hbm [shape: f32[2,64], index: 4, kind: output, shape index: {}]
  %s5 = sld [smem:[#allocation0]]
  $region38: #{tpu_custom_call.1} parent=0
    _
  %s7 = ssub.s32 1, %s5
  %s8 = scalar_select 0, %s7, %s5
  $region1: #{tpu_custom_call.1} parent=0
    #allocation2 [shape = 'u8[8192]{0}', space=vmem, size = 0x2000, scoped, tag = 'input window, operand 0, single buffered']
    #allocation3 [shape = 's32[1]{0}', space=sflag, size = 0x4, scoped, tag = 'scoped memory for tpu_custom_call.1']
    #allocation4 [shape = 's32[1]{0}', space=sflag, size = 0x4, scoped, tag = 'scoped memory for tpu_custom_call.1']
    #allocation5 [shape = 'u8[32768]{0}', space=vmem, size = 0x8000, scoped, tag = 'input window, operand 1, single buffered']
    #allocation6 [shape = 's32[1]{0}', space=sflag, size = 0x4, scoped, tag = 'scoped memory for tpu_custom_call.1']
    #allocation7 [shape = 'u8[65536]{0}', space=vmem, size = 0x10000, scoped, tag = 'input window, operand 2, single buffered']
    #allocation8 [shape = 'u8[1024]{0}', space=vmem, size = 0x400, scoped, tag = 'output window, operand 0, single buffered']
    %9 = vsyncpa [#allocation3], 0
    %10 = vsyncpa [#allocation6], 0
    %11 = vsyncpa [#allocation4], 0
    // Predicated region
    $region2: #{tpu_custom_call.1} parent=1 // pred_check
      _
    $region3: #{tpu_custom_call.1} parent=1 // pred_check_branch
      %13 = sbr.rel (0) target = $region5
    $region4: #{tpu_custom_call.1} parent=1 // pred_region
      %15 = vsyncadd [#allocation3], 0
      %s16 = sshll.u32 %s0, 4
      %s17 = int_to_ptr.hbm [resolvable:$true] %s16
      %s18 = sshll.u32 [#allocation2], 4
      %s19 = int_to_ptr.vmem [resolvable:$true] %s18
      %24 = dma.hbm_to_vmem [thread:$0]  %s17, 256, %s19, [#allocation3], 128, 128, 8
    $region5: #{tpu_custom_call.1} parent=1 // pred_fallthru
      _
    // Predicated region
    $region6: #{tpu_custom_call.1} parent=1 // pred_check
      _
    $region7: #{tpu_custom_call.1} parent=1 // pred_check_branch
      %26 = sbr.rel (0) target = $region9
    $region8: #{tpu_custom_call.1} parent=1 // pred_region
      %28 = vsyncadd [#allocation6], 0
      %s29 = sshll.u32 %s1, 4
      %s30 = int_to_ptr.hbm [resolvable:$true] %s29
      %s31 = sshll.u32 [#allocation5], 4
      %s32 = int_to_ptr.vmem [resolvable:$true] %s31
      %37 = dma.hbm_to_vmem [thread:$0]  %s30, 1024, %s32, [#allocation6], 256, 256, 16
    $region9: #{tpu_custom_call.1} parent=1 // pred_fallthru
      _
    // Predicated region
    $region10: #{tpu_custom_call.1} parent=1 // pred_check
      _
    $region11: #{tpu_custom_call.1} parent=1 // pred_check_branch
      %39 = sbr.rel (0) target = $region13
    $region12: #{tpu_custom_call.1} parent=1 // pred_region
      %41 = vsyncadd [#allocation6], 0
      %s42 = sshll.u32 %s2, 4
      %s43 = int_to_ptr.hbm [resolvable:$true] %s42
      %s44 = sshll.u32 [#allocation7], 4
      %s45 = int_to_ptr.vmem [resolvable:$true] %s44
      %50 = dma.hbm_to_vmem [thread:$0]  %s43, 2048, %s45, [#allocation6], 256, 256, 16
    $region13: #{tpu_custom_call.1} parent=1 // pred_fallthru
      _
    // Predicated region
    $region14: #{tpu_custom_call.1} parent=1 // pred_check
      _
    $region15: #{tpu_custom_call.1} parent=1 // pred_check_branch
      %52 = sbr.rel (0) target = $region17
    $region16: #{tpu_custom_call.1} parent=1 // pred_region
      _
    $region17: #{tpu_custom_call.1} parent=1 // pred_fallthru
      _
    // Predicated region
    $region18: #{tpu_custom_call.1} parent=1 // pred_check
      _
    $region19: #{tpu_custom_call.1} parent=1 // pred_check_branch
      %54 = sbr.rel (0) target = $region21
    $region20: #{tpu_custom_call.1} parent=1 // pred_region
      %56 = dma.done [#allocation3], 256
    $region21: #{tpu_custom_call.1} parent=1 // pred_fallthru
      _
    // Predicated region
    $region22: #{tpu_custom_call.1} parent=1 // pred_check
      _
    $region23: #{tpu_custom_call.1} parent=1 // pred_check_branch
      %58 = sbr.rel (0) target = $region25
    $region24: #{tpu_custom_call.1} parent=1 // pred_region
      %60 = dma.done [#allocation6], 1024
    $region25: #{tpu_custom_call.1} parent=1 // pred_fallthru
      _
    // Predicated region
    $region26: #{tpu_custom_call.1} parent=1 // pred_check
      _
    $region27: #{tpu_custom_call.1} parent=1 // pred_check_branch
      %62 = sbr.rel (0) target = $region29
    $region28: #{tpu_custom_call.1} parent=1 // pred_region
      %64 = dma.done [#allocation6], 2048
    $region29: #{tpu_custom_call.1} parent=1 // pred_fallthru
      _
    %v65 = vld [vmem:[#allocation5] sm:$0xff]
    %v66 = vld [vmem:[#allocation5 + $0x8] sm:$0xff]
    %v67 = vld [vmem:[#allocation5 + $0x10] sm:$0xff]
    %v68 = vld [vmem:[#allocation5 + $0x18] sm:$0xff]
    %v69 = vld [vmem:[#allocation5 + $0x20] sm:$0xff]
    %v70 = vld [vmem:[#allocation5 + $0x28] sm:$0xff]
    %v71 = vld [vmem:[#allocation5 + $0x30] sm:$0xff]
    %v72 = vld [vmem:[#allocation5 + $0x38] sm:$0xff]
    %v73 = vld [vmem:[#allocation7] sm:$0xff]
    %v74 = vld [vmem:[#allocation7 + $0x8] sm:$0xff]
    %v75 = vld [vmem:[#allocation7 + $0x10] sm:$0xff]
    %v76 = vld [vmem:[#allocation7 + $0x18] sm:$0xff]
    %v77 = vld [vmem:[#allocation7 + $0x20] sm:$0xff]
    %v78 = vld [vmem:[#allocation7 + $0x28] sm:$0xff]
    %v79 = vld [vmem:[#allocation7 + $0x30] sm:$0xff]
    %v80 = vld [vmem:[#allocation7 + $0x38] sm:$0xff]
    %v81 = vld [vmem:[#allocation7 + $0x40] sm:$0xff]
    %v82 = vld [vmem:[#allocation7 + $0x48] sm:$0xff]
    %v83 = vld [vmem:[#allocation7 + $0x50] sm:$0xff]
    %v84 = vld [vmem:[#allocation7 + $0x58] sm:$0xff]
    %v85 = vld [vmem:[#allocation7 + $0x60] sm:$0xff]
    %v86 = vld [vmem:[#allocation7 + $0x68] sm:$0xff]
    %v87 = vld [vmem:[#allocation7 + $0x70] sm:$0xff]
    %v88 = vld [vmem:[#allocation7 + $0x78] sm:$0xff]
    %v89 = vld [vmem:[%s3] sm:$0x3]
    %v90 = vld [vmem:[#allocation2] sm:$0xff]
    %v91 = vld [vmem:[#allocation2 + $0x8] sm:$0xff]
    %v93 = vperm.slane %v89, 0
    %v94 = vperm.slane %v89, 1
    %vm97 = vcmask 261120
    %v99 = vsel %vm97, %v90, 0
    %v102 = vsel %vm97, %v91, 0
    %104 = vmatpush.msra.mxu0 0.0
    %105 = vmatpush.msra.mxu0 0.0
    %106 = vmatpush.msra.mxu0 0.0
    %107 = vmatpush.msra.mxu0 0.0
    %108 = vmatpush.msra.mxu0 0.0
    %109 = vmatpush.msra.mxu0 0.0
    %110 = vmatpush.msra.mxu0 0.0
    %111 = vmatpush.msra.mxu0 0.0
    %112 = vmatpush.msra.mxu0 0.0
    %113 = vmatpush.msra.mxu0 0.0
    %114 = vmatpush.msra.mxu0 0.0
    %115 = vmatpush.msra.mxu0 0.0
    %116 = vmatpush.msra.mxu0 %v71
    %117 = vmatpush.msra.mxu0 %v69
    %118 = vmatpush.msra.mxu0 %v67
    %119 = vmatpush.msra.mxu0 %v65
    %120 = vmatmul.f32.gmra.mxu0 %v99
    %v121 = vpop.f32.mrf.mxu0
    %v122 = vadd.f32 %v93, %v121
    %123 = vmatmul.f32.gmra.mxu0 %v102
    %v124 = vpop.f32.mrf.mxu0
    %v125 = vadd.f32 %v93, %v124
    %126 = vdwg.mxu0
    %127 = vmatpush.msra.mxu0 0.0
    %128 = vmatpush.msra.mxu0 0.0
    %129 = vmatpush.msra.mxu0 0.0
    %130 = vmatpush.msra.mxu0 0.0
    %131 = vmatpush.msra.mxu0 0.0
    %132 = vmatpush.msra.mxu0 0.0
    %133 = vmatpush.msra.mxu0 0.0
    %134 = vmatpush.msra.mxu0 0.0
    %135 = vmatpush.msra.mxu0 0.0
    %136 = vmatpush.msra.mxu0 0.0
    %137 = vmatpush.msra.mxu0 0.0
    %138 = vmatpush.msra.mxu0 0.0
    %139 = vmatpush.msra.mxu0 %v72
    %140 = vmatpush.msra.mxu0 %v70
    %141 = vmatpush.msra.mxu0 %v68
    %142 = vmatpush.msra.mxu0 %v66
    %143 = vmatmul.f32.gmra.mxu0 %v99
    %v144 = vpop.f32.mrf.mxu0
    %v145 = vadd.f32 %v94, %v144
    %146 = vmatmul.f32.gmra.mxu0 %v102
    %v147 = vpop.f32.mrf.mxu0
    %v148 = vadd.f32 %v94, %v147
    %149 = vdwg.mxu0
    %vm150 = vcmask 523264
    %v152 = vsel %vm150, 0.0, 0
    %154 = vmatpush.msra.mxu0 0.0
    %155 = vmatpush.msra.mxu0 0.0
    %156 = vmatpush.msra.mxu0 0.0
    %157 = vmatpush.msra.mxu0 0.0
    %158 = vmatpush.msra.mxu0 0.0
    %159 = vmatpush.msra.mxu0 0.0
    %160 = vmatpush.msra.mxu0 0.0
    %161 = vmatpush.msra.mxu0 0.0
    %162 = vmatpush.msra.mxu0 %v87
    %163 = vmatpush.msra.mxu0 %v85
    %164 = vmatpush.msra.mxu0 %v83
    %165 = vmatpush.msra.mxu0 %v81
    %166 = vmatpush.msra.mxu0 %v79
    %167 = vmatpush.msra.mxu0 %v77
    %168 = vmatpush.msra.mxu0 %v75
    %169 = vmatpush.msra.mxu0 %v73
    %170 = vmatmul.f32.gmra.mxu0 %v152
    %v171 = vpop.f32.mrf.mxu0
    %v172 = vadd.f32 0.0, %v171
    %173 = vdwg.mxu0
    %174 = vmatpush.msra.mxu0 0.0
    %175 = vmatpush.msra.mxu0 0.0
    %176 = vmatpush.msra.mxu0 0.0
    %177 = vmatpush.msra.mxu0 0.0
    %178 = vmatpush.msra.mxu0 0.0
    %179 = vmatpush.msra.mxu0 0.0
    %180 = vmatpush.msra.mxu0 0.0
    %181 = vmatpush.msra.mxu0 0.0
    %182 = vmatpush.msra.mxu0 %v88
    %183 = vmatpush.msra.mxu0 %v86
    %184 = vmatpush.msra.mxu0 %v84
    %185 = vmatpush.msra.mxu0 %v82
    %186 = vmatpush.msra.mxu0 %v80
    %187 = vmatpush.msra.mxu0 %v78
    %188 = vmatpush.msra.mxu0 %v76
    %189 = vmatpush.msra.mxu0 %v74
    %190 = vmatmul.f32.gmra.mxu0 %v152
    %v191 = vpop.f32.mrf.mxu0
    %v192 = vadd.f32 0.0, %v191
    %193 = vdwg.mxu0
    %v196 = vrot.slane %v172, 1
    %v197 = vrot.slane %v192, 1
    %v202 = vadd.f32 %v122, %v172
    %v203 = vadd.f32 %v145, %v192
    %v204 = vadd.f32 %v125, %v196
    %v205 = vadd.f32 %v148, %v197
    %v206 = vxor.u32 %v202, 2147483648
    %v207 = vxor.u32 %v203, 2147483648
    %v208 = vxor.u32 %v204, 2147483648
    %v209 = vxor.u32 %v205, 2147483648
    %v210 = vmul.f32 %v206, 1.442695
    %v211 = vpow.pop %v210
    %v212 = vmul.f32 %v207, 1.442695
    %v213 = vpow.pop %v212
    %v214 = vmul.f32 %v208, 1.442695
    %v215 = vpow.pop %v214
    %v216 = vmul.f32 %v209, 1.442695
    %v217 = vpow.pop %v216
    %v218 = vadd.f32 %v211, 1.0
    %v219 = vadd.f32 %v213, 1.0
    %v220 = vadd.f32 %v215, 1.0
    %v221 = vadd.f32 %v217, 1.0
    %v222 = vrcp.pop %v218
    %v223 = vmul.f32 %v218, %v222
    %v224 = vsub.f32 1.0, %v223
    %v225 = vmul.f32 %v222, %v224
    %v226 = vadd.f32 %v222, %v225
    %vm227 = vweird.f32 %v218
    %vm228 = vweird.f32 %v222
    %vm229 = vmor %vm227, %vm228
    %v230 = vsel %vm229, %v222, %v226
    %v231 = vand.u32 2147483647, %v218
    %vm232 = vcmp.eq.f32.partialorder %v231, 8.507059e+37
    %v233 = vand.u32 %v218, 2147483648
    %v234 = vor.u32 1.1754944e-38, %v233
    %v235 = vsel %vm232, %v234, %v230
    %v236 = vmul.f32 1.0, %v235
    %v237 = vrcp.pop %v219
    %v238 = vmul.f32 %v219, %v237
    %v239 = vsub.f32 1.0, %v238
    %v240 = vmul.f32 %v237, %v239
    %v241 = vadd.f32 %v237, %v240
    %vm242 = vweird.f32 %v219
    %vm243 = vweird.f32 %v237
    %vm244 = vmor %vm242, %vm243
    %v245 = vsel %vm244, %v237, %v241
    %v246 = vand.u32 2147483647, %v219
    %vm247 = vcmp.eq.f32.partialorder %v246, 8.507059e+37
    %v248 = vand.u32 %v219, 2147483648
    %v249 = vor.u32 1.1754944e-38, %v248
    %v250 = vsel %vm247, %v249, %v245
    %v251 = vmul.f32 1.0, %v250
    %v252 = vrcp.pop %v220
    %v253 = vmul.f32 %v220, %v252
    %v254 = vsub.f32 1.0, %v253
    %v255 = vmul.f32 %v252, %v254
    %v256 = vadd.f32 %v252, %v255
    %vm257 = vweird.f32 %v220
    %vm258 = vweird.f32 %v252
    %vm259 = vmor %vm257, %vm258
    %v260 = vsel %vm259, %v252, %v256
    %v261 = vand.u32 2147483647, %v220
    %vm262 = vcmp.eq.f32.partialorder %v261, 8.507059e+37
    %v263 = vand.u32 %v220, 2147483648
    %v264 = vor.u32 1.1754944e-38, %v263
    %v265 = vsel %vm262, %v264, %v260
    %v266 = vmul.f32 1.0, %v265
    %v267 = vrcp.pop %v221
    %v268 = vmul.f32 %v221, %v267
    %v269 = vsub.f32 1.0, %v268
    %v270 = vmul.f32 %v267, %v269
    %v271 = vadd.f32 %v267, %v270
    %vm272 = vweird.f32 %v221
    %vm273 = vweird.f32 %v267
    %vm274 = vmor %vm272, %vm273
    %v275 = vsel %vm274, %v267, %v271
    %v276 = vand.u32 2147483647, %v221
    %vm277 = vcmp.eq.f32.partialorder %v276, 8.507059e+37
    %v278 = vand.u32 %v221, 2147483648
    %v279 = vor.u32 1.1754944e-38, %v278
    %v280 = vsel %vm277, %v279, %v275
    %v281 = vmul.f32 1.0, %v280
    %v282 = vtanh.pop %v203
    %v283 = vtanh.pop %v205
    %v284 = vmul.f32 %v236, 0.0
    %v285 = vmul.f32 %v266, 0.0
    %v286 = vmul.f32 %v236, %v282
    %v287 = vmul.f32 %v266, %v283
    %290 = vrot.lane.b32.xlu0 %v286, 64
    %v291 = vpop.permute.xlu0 %290
    %292 = vrot.lane.b32.xlu0 %v287, 64
    %v293 = vpop.permute.xlu0 %292
    %v296 = vadd.f32 %v284, %v291
    %v297 = vadd.f32 %v285, %v293
    %v298 = vtanh.pop %v296
    %v299 = vtanh.pop %v297
    %v300 = vmul.f32 %v251, %v298
    %v301 = vmul.f32 %v281, %v299
    %v302 = vadd.f32 %v300, 0.0
    %v303 = vadd.f32 %v301, 0.0
    %v306 = vrot.slane %v301, 7
    %vm307 = vcmask 1041409
    %v308 = vsel %vm307, %v306, %v300
    %309 = vrot.lane.b32.xlu0 %v308, 64
    %v310 = vpop.permute.xlu0 %309
    %v311 = vsel %vm150, %v310, 0
    %313 = vmatpush.msra.mxu0 0.0
    %314 = vmatpush.msra.mxu0 0.0
    %315 = vmatpush.msra.mxu0 0.0
    %316 = vmatpush.msra.mxu0 0.0
    %317 = vmatpush.msra.mxu0 0.0
    %318 = vmatpush.msra.mxu0 0.0
    %319 = vmatpush.msra.mxu0 0.0
    %320 = vmatpush.msra.mxu0 0.0
    %321 = vmatpush.msra.mxu0 %v87
    %322 = vmatpush.msra.mxu0 %v85
    %323 = vmatpush.msra.mxu0 %v83
    %324 = vmatpush.msra.mxu0 %v81
    %325 = vmatpush.msra.mxu0 %v79
    %326 = vmatpush.msra.mxu0 %v77
    %327 = vmatpush.msra.mxu0 %v75
    %328 = vmatpush.msra.mxu0 %v73
    %329 = vmatmul.f32.gmra.mxu0 %v311
    %v330 = vpop.f32.mrf.mxu0
    %v331 = vadd.f32 0.0, %v330
    %332 = vdwg.mxu0
    %333 = vmatpush.msra.mxu0 0.0
    %334 = vmatpush.msra.mxu0 0.0
    %335 = vmatpush.msra.mxu0 0.0
    %336 = vmatpush.msra.mxu0 0.0
    %337 = vmatpush.msra.mxu0 0.0
    %338 = vmatpush.msra.mxu0 0.0
    %339 = vmatpush.msra.mxu0 0.0
    %340 = vmatpush.msra.mxu0 0.0
    %341 = vmatpush.msra.mxu0 %v88
    %342 = vmatpush.msra.mxu0 %v86
    %343 = vmatpush.msra.mxu0 %v84
    %344 = vmatpush.msra.mxu0 %v82
    %345 = vmatpush.msra.mxu0 %v80
    %346 = vmatpush.msra.mxu0 %v78
    %347 = vmatpush.msra.mxu0 %v76
    %348 = vmatpush.msra.mxu0 %v74
    %349 = vmatmul.f32.gmra.mxu0 %v311
    %v350 = vpop.f32.mrf.mxu0
    %v351 = vadd.f32 0.0, %v350
    %352 = vdwg.mxu0
    %v355 = vrot.slane %v331, 7
    %v356 = vrot.slane %v351, 7
    %v361 = vadd.f32 %v122, %v355
    %v362 = vadd.f32 %v145, %v356
    %v363 = vadd.f32 %v125, %v331
    %v364 = vadd.f32 %v148, %v351
    %v365 = vxor.u32 %v361, 2147483648
    %v366 = vxor.u32 %v362, 2147483648
    %v367 = vxor.u32 %v363, 2147483648
    %v368 = vxor.u32 %v364, 2147483648
    %v369 = vmul.f32 %v365, 1.442695
    %v370 = vpow.pop %v369
    %v371 = vmul.f32 %v366, 1.442695
    %v372 = vpow.pop %v371
    %v373 = vmul.f32 %v367, 1.442695
    %v374 = vpow.pop %v373
    %v375 = vmul.f32 %v368, 1.442695
    %v376 = vpow.pop %v375
    %v377 = vadd.f32 %v370, 1.0
    %v378 = vadd.f32 %v372, 1.0
    %v379 = vadd.f32 %v374, 1.0
    %v380 = vadd.f32 %v376, 1.0
    %v381 = vrcp.pop %v377
    %v382 = vmul.f32 %v377, %v381
    %v383 = vsub.f32 1.0, %v382
    %v384 = vmul.f32 %v381, %v383
    %v385 = vadd.f32 %v381, %v384
    %vm386 = vweird.f32 %v377
    %vm387 = vweird.f32 %v381
    %vm388 = vmor %vm386, %vm387
    %v389 = vsel %vm388, %v381, %v385
    %v390 = vand.u32 2147483647, %v377
    %vm391 = vcmp.eq.f32.partialorder %v390, 8.507059e+37
    %v392 = vand.u32 %v377, 2147483648
    %v393 = vor.u32 1.1754944e-38, %v392
    %v394 = vsel %vm391, %v393, %v389
    %v395 = vmul.f32 1.0, %v394
    %v396 = vrcp.pop %v378
    %v397 = vmul.f32 %v378, %v396
    %v398 = vsub.f32 1.0, %v397
    %v399 = vmul.f32 %v396, %v398
    %v400 = vadd.f32 %v396, %v399
    %vm401 = vweird.f32 %v378
    %vm402 = vweird.f32 %v396
    %vm403 = vmor %vm401, %vm402
    %v404 = vsel %vm403, %v396, %v400
    %v405 = vand.u32 2147483647, %v378
    %vm406 = vcmp.eq.f32.partialorder %v405, 8.507059e+37
    %v407 = vand.u32 %v378, 2147483648
    %v408 = vor.u32 1.1754944e-38, %v407
    %v409 = vsel %vm406, %v408, %v404
    %v410 = vmul.f32 1.0, %v409
    %v411 = vrcp.pop %v379
    %v412 = vmul.f32 %v379, %v411
    %v413 = vsub.f32 1.0, %v412
    %v414 = vmul.f32 %v411, %v413
    %v415 = vadd.f32 %v411, %v414
    %vm416 = vweird.f32 %v379
    %vm417 = vweird.f32 %v411
    %vm418 = vmor %vm416, %vm417
    %v419 = vsel %vm418, %v411, %v415
    %v420 = vand.u32 2147483647, %v379
    %vm421 = vcmp.eq.f32.partialorder %v420, 8.507059e+37
    %v422 = vand.u32 %v379, 2147483648
    %v423 = vor.u32 1.1754944e-38, %v422
    %v424 = vsel %vm421, %v423, %v419
    %v425 = vmul.f32 1.0, %v424
    %v426 = vrcp.pop %v380
    %v427 = vmul.f32 %v380, %v426
    %v428 = vsub.f32 1.0, %v427
    %v429 = vmul.f32 %v426, %v428
    %v430 = vadd.f32 %v426, %v429
    %vm431 = vweird.f32 %v380
    %vm432 = vweird.f32 %v426
    %vm433 = vmor %vm431, %vm432
    %v434 = vsel %vm433, %v426, %v430
    %v435 = vand.u32 2147483647, %v380
    %vm436 = vcmp.eq.f32.partialorder %v435, 8.507059e+37
    %v437 = vand.u32 %v380, 2147483648
    %v438 = vor.u32 1.1754944e-38, %v437
    %v439 = vsel %vm436, %v438, %v434
    %v440 = vmul.f32 1.0, %v439
    %v441 = vtanh.pop %v362
    %v442 = vtanh.pop %v364
    %v445 = vrot.slane %v296, 7
    %v446 = vrot.slane %v297, 7
    %v449 = vmul.f32 %v395, %v445
    %v450 = vmul.f32 %v425, %v446
    %v451 = vmul.f32 %v395, %v441
    %v452 = vmul.f32 %v425, %v442
    %455 = vrot.lane.b32.xlu0 %v451, 64
    %v456 = vpop.permute.xlu0 %455
    %457 = vrot.lane.b32.xlu0 %v452, 64
    %v458 = vpop.permute.xlu0 %457
    %v461 = vadd.f32 %v449, %v456
    %v462 = vadd.f32 %v450, %v458
    %v463 = vtanh.pop %v461
    %v464 = vtanh.pop %v462
    %v465 = vmul.f32 %v410, %v463
    %v466 = vmul.f32 %v440, %v464
    %v469 = vrot.slane %v465, 1
    %v470 = vrot.slane %v466, 1
    %v473 = vadd.f32 %v302, %v469
    %v474 = vadd.f32 %v303, %v470
    %v475 = vsel %vm307, %v466, %v469
    %476 = vrot.lane.b32.xlu0 %v475, 64
    %v477 = vpop.permute.xlu0 %476
    %v478 = vsel %vm150, %v477, 0
    %480 = vmatpush.msra.mxu0 0.0
    %481 = vmatpush.msra.mxu0 0.0
    %482 = vmatpush.msra.mxu0 0.0
    %483 = vmatpush.msra.mxu0 0.0
    %484 = vmatpush.msra.mxu0 0.0
    %485 = vmatpush.msra.mxu0 0.0
    %486 = vmatpush.msra.mxu0 0.0
    %487 = vmatpush.msra.mxu0 0.0
    %488 = vmatpush.msra.mxu0 %v87
    %489 = vmatpush.msra.mxu0 %v85
    %490 = vmatpush.msra.mxu0 %v83
    %491 = vmatpush.msra.mxu0 %v81
    %492 = vmatpush.msra.mxu0 %v79
    %493 = vmatpush.msra.mxu0 %v77
    %494 = vmatpush.msra.mxu0 %v75
    %495 = vmatpush.msra.mxu0 %v73
    %496 = vmatmul.f32.gmra.mxu0 %v478
    %v497 = vpop.f32.mrf.mxu0
    %v498 = vadd.f32 0.0, %v497
    %499 = vdwg.mxu0
    %500 = vmatpush.msra.mxu0 0.0
    %501 = vmatpush.msra.mxu0 0.0
    %502 = vmatpush.msra.mxu0 0.0
    %503 = vmatpush.msra.mxu0 0.0
    %504 = vmatpush.msra.mxu0 0.0
    %505 = vmatpush.msra.mxu0 0.0
    %506 = vmatpush.msra.mxu0 0.0
    %507 = vmatpush.msra.mxu0 0.0
    %508 = vmatpush.msra.mxu0 %v88
    %509 = vmatpush.msra.mxu0 %v86
    %510 = vmatpush.msra.mxu0 %v84
    %511 = vmatpush.msra.mxu0 %v82
    %512 = vmatpush.msra.mxu0 %v80
    %513 = vmatpush.msra.mxu0 %v78
    %514 = vmatpush.msra.mxu0 %v76
    %515 = vmatpush.msra.mxu0 %v74
    %516 = vmatmul.f32.gmra.mxu0 %v478
    %v517 = vpop.f32.mrf.mxu0
    %v518 = vadd.f32 0.0, %v517
    %519 = vdwg.mxu0
    %v522 = vrot.slane %v498, 6
    %v523 = vrot.slane %v518, 6
    %v524 = vrot.slane %v498, 7
    %v525 = vrot.slane %v518, 7
    %v530 = vadd.f32 %v122, %v522
    %v531 = vadd.f32 %v145, %v523
    %v532 = vadd.f32 %v125, %v524
    %v533 = vadd.f32 %v148, %v525
    %v534 = vxor.u32 %v530, 2147483648
    %v535 = vxor.u32 %v531, 2147483648
    %v536 = vxor.u32 %v532, 2147483648
    %v537 = vxor.u32 %v533, 2147483648
    %v538 = vmul.f32 %v534, 1.442695
    %v539 = vpow.pop %v538
    %v540 = vmul.f32 %v535, 1.442695
    %v541 = vpow.pop %v540
    %v542 = vmul.f32 %v536, 1.442695
    %v543 = vpow.pop %v542
    %v544 = vmul.f32 %v537, 1.442695
    %v545 = vpow.pop %v544
    %v546 = vadd.f32 %v539, 1.0
    %v547 = vadd.f32 %v541, 1.0
    %v548 = vadd.f32 %v543, 1.0
    %v549 = vadd.f32 %v545, 1.0
    %v550 = vrcp.pop %v546
    %v551 = vmul.f32 %v546, %v550
    %v552 = vsub.f32 1.0, %v551
    %v553 = vmul.f32 %v550, %v552
    %v554 = vadd.f32 %v550, %v553
    %vm555 = vweird.f32 %v546
    %vm556 = vweird.f32 %v550
    %vm557 = vmor %vm555, %vm556
    %v558 = vsel %vm557, %v550, %v554
    %v559 = vand.u32 2147483647, %v546
    %vm560 = vcmp.eq.f32.partialorder %v559, 8.507059e+37
    %v561 = vand.u32 %v546, 2147483648
    %v562 = vor.u32 1.1754944e-38, %v561
    %v563 = vsel %vm560, %v562, %v558
    %v564 = vmul.f32 1.0, %v563
    %v565 = vrcp.pop %v547
    %v566 = vmul.f32 %v547, %v565
    %v567 = vsub.f32 1.0, %v566
    %v568 = vmul.f32 %v565, %v567
    %v569 = vadd.f32 %v565, %v568
    %vm570 = vweird.f32 %v547
    %vm571 = vweird.f32 %v565
    %vm572 = vmor %vm570, %vm571
    %v573 = vsel %vm572, %v565, %v569
    %v574 = vand.u32 2147483647, %v547
    %vm575 = vcmp.eq.f32.partialorder %v574, 8.507059e+37
    %v576 = vand.u32 %v547, 2147483648
    %v577 = vor.u32 1.1754944e-38, %v576
    %v578 = vsel %vm575, %v577, %v573
    %v579 = vmul.f32 1.0, %v578
    %v580 = vrcp.pop %v548
    %v581 = vmul.f32 %v548, %v580
    %v582 = vsub.f32 1.0, %v581
    %v583 = vmul.f32 %v580, %v582
    %v584 = vadd.f32 %v580, %v583
    %vm585 = vweird.f32 %v548
    %vm586 = vweird.f32 %v580
    %vm587 = vmor %vm585, %vm586
    %v588 = vsel %vm587, %v580, %v584
    %v589 = vand.u32 2147483647, %v548
    %vm590 = vcmp.eq.f32.partialorder %v589, 8.507059e+37
    %v591 = vand.u32 %v548, 2147483648
    %v592 = vor.u32 1.1754944e-38, %v591
    %v593 = vsel %vm590, %v592, %v588
    %v594 = vmul.f32 1.0, %v593
    %v595 = vrcp.pop %v549
    %v596 = vmul.f32 %v549, %v595
    %v597 = vsub.f32 1.0, %v596
    %v598 = vmul.f32 %v595, %v597
    %v599 = vadd.f32 %v595, %v598
    %vm600 = vweird.f32 %v549
    %vm601 = vweird.f32 %v595
    %vm602 = vmor %vm600, %vm601
    %v603 = vsel %vm602, %v595, %v599
    %v604 = vand.u32 2147483647, %v549
    %vm605 = vcmp.eq.f32.partialorder %v604, 8.507059e+37
    %v606 = vand.u32 %v549, 2147483648
    %v607 = vor.u32 1.1754944e-38, %v606
    %v608 = vsel %vm605, %v607, %v603
    %v609 = vmul.f32 1.0, %v608
    %v610 = vtanh.pop %v531
    %v611 = vtanh.pop %v533
    %v614 = vrot.slane %v461, 7
    %v615 = vrot.slane %v462, 7
    %v618 = vmul.f32 %v564, %v614
    %v619 = vmul.f32 %v594, %v615
    %v620 = vmul.f32 %v564, %v610
    %v621 = vmul.f32 %v594, %v611
    %624 = vrot.lane.b32.xlu0 %v620, 64
    %v625 = vpop.permute.xlu0 %624
    %626 = vrot.lane.b32.xlu0 %v621, 64
    %v627 = vpop.permute.xlu0 %626
    %v630 = vadd.f32 %v618, %v625
    %v631 = vadd.f32 %v619, %v627
    %v632 = vtanh.pop %v630
    %v633 = vtanh.pop %v631
    %v634 = vmul.f32 %v579, %v632
    %v635 = vmul.f32 %v609, %v633
    %v638 = vrot.slane %v634, 2
    %v639 = vrot.slane %v635, 2
    %v642 = vadd.f32 %v473, %v638
    %v643 = vadd.f32 %v474, %v639
    %v644 = vrot.slane %v635, 1
    %v645 = vsel %vm307, %v644, %v638
    %646 = vrot.lane.b32.xlu0 %v645, 64
    %v647 = vpop.permute.xlu0 %646
    %v648 = vsel %vm150, %v647, 0
    %650 = vmatpush.msra.mxu0 0.0
    %651 = vmatpush.msra.mxu0 0.0
    %652 = vmatpush.msra.mxu0 0.0
    %653 = vmatpush.msra.mxu0 0.0
    %654 = vmatpush.msra.mxu0 0.0
    %655 = vmatpush.msra.mxu0 0.0
    %656 = vmatpush.msra.mxu0 0.0
    %657 = vmatpush.msra.mxu0 0.0
    %658 = vmatpush.msra.mxu0 %v87
    %659 = vmatpush.msra.mxu0 %v85
    %660 = vmatpush.msra.mxu0 %v83
    %661 = vmatpush.msra.mxu0 %v81
    %662 = vmatpush.msra.mxu0 %v79
    %663 = vmatpush.msra.mxu0 %v77
    %664 = vmatpush.msra.mxu0 %v75
    %665 = vmatpush.msra.mxu0 %v73
    %666 = vmatmul.f32.gmra.mxu0 %v648
    %v667 = vpop.f32.mrf.mxu0
    %v668 = vadd.f32 0.0, %v667
    %669 = vdwg.mxu0
    %670 = vmatpush.msra.mxu0 0.0
    %671 = vmatpush.msra.mxu0 0.0
    %672 = vmatpush.msra.mxu0 0.0
    %673 = vmatpush.msra.mxu0 0.0
    %674 = vmatpush.msra.mxu0 0.0
    %675 = vmatpush.msra.mxu0 0.0
    %676 = vmatpush.msra.mxu0 0.0
    %677 = vmatpush.msra.mxu0 0.0
    %678 = vmatpush.msra.mxu0 %v88
    %679 = vmatpush.msra.mxu0 %v86
    %680 = vmatpush.msra.mxu0 %v84
    %681 = vmatpush.msra.mxu0 %v82
    %682 = vmatpush.msra.mxu0 %v80
    %683 = vmatpush.msra.mxu0 %v78
    %684 = vmatpush.msra.mxu0 %v76
    %685 = vmatpush.msra.mxu0 %v74
    %686 = vmatmul.f32.gmra.mxu0 %v648
    %v687 = vpop.f32.mrf.mxu0
    %v688 = vadd.f32 0.0, %v687
    %689 = vdwg.mxu0
    %v692 = vrot.slane %v668, 5
    %v693 = vrot.slane %v688, 5
    %v694 = vrot.slane %v668, 6
    %v695 = vrot.slane %v688, 6
    %v700 = vadd.f32 %v122, %v692
    %v701 = vadd.f32 %v145, %v693
    %v702 = vadd.f32 %v125, %v694
    %v703 = vadd.f32 %v148, %v695
    %v704 = vxor.u32 %v700, 2147483648
    %v705 = vxor.u32 %v701, 2147483648
    %v706 = vxor.u32 %v702, 2147483648
    %v707 = vxor.u32 %v703, 2147483648
    %v708 = vmul.f32 %v704, 1.442695
    %v709 = vpow.pop %v708
    %v710 = vmul.f32 %v705, 1.442695
    %v711 = vpow.pop %v710
    %v712 = vmul.f32 %v706, 1.442695
    %v713 = vpow.pop %v712
    %v714 = vmul.f32 %v707, 1.442695
    %v715 = vpow.pop %v714
    %v716 = vadd.f32 %v709, 1.0
    %v717 = vadd.f32 %v711, 1.0
    %v718 = vadd.f32 %v713, 1.0
    %v719 = vadd.f32 %v715, 1.0
    %v720 = vrcp.pop %v716
    %v721 = vmul.f32 %v716, %v720
    %v722 = vsub.f32 1.0, %v721
    %v723 = vmul.f32 %v720, %v722
    %v724 = vadd.f32 %v720, %v723
    %vm725 = vweird.f32 %v716
    %vm726 = vweird.f32 %v720
    %vm727 = vmor %vm725, %vm726
    %v728 = vsel %vm727, %v720, %v724
    %v729 = vand.u32 2147483647, %v716
    %vm730 = vcmp.eq.f32.partialorder %v729, 8.507059e+37
    %v731 = vand.u32 %v716, 2147483648
    %v732 = vor.u32 1.1754944e-38, %v731
    %v733 = vsel %vm730, %v732, %v728
    %v734 = vmul.f32 1.0, %v733
    %v735 = vrcp.pop %v717
    %v736 = vmul.f32 %v717, %v735
    %v737 = vsub.f32 1.0, %v736
    %v738 = vmul.f32 %v735, %v737
    %v739 = vadd.f32 %v735, %v738
    %vm740 = vweird.f32 %v717
    %vm741 = vweird.f32 %v735
    %vm742 = vmor %vm740, %vm741
    %v743 = vsel %vm742, %v735, %v739
    %v744 = vand.u32 2147483647, %v717
    %vm745 = vcmp.eq.f32.partialorder %v744, 8.507059e+37
    %v746 = vand.u32 %v717, 2147483648
    %v747 = vor.u32 1.1754944e-38, %v746
    %v748 = vsel %vm745, %v747, %v743
    %v749 = vmul.f32 1.0, %v748
    %v750 = vrcp.pop %v718
    %v751 = vmul.f32 %v718, %v750
    %v752 = vsub.f32 1.0, %v751
    %v753 = vmul.f32 %v750, %v752
    %v754 = vadd.f32 %v750, %v753
    %vm755 = vweird.f32 %v718
    %vm756 = vweird.f32 %v750
    %vm757 = vmor %vm755, %vm756
    %v758 = vsel %vm757, %v750, %v754
    %v759 = vand.u32 2147483647, %v718
    %vm760 = vcmp.eq.f32.partialorder %v759, 8.507059e+37
    %v761 = vand.u32 %v718, 2147483648
    %v762 = vor.u32 1.1754944e-38, %v761
    %v763 = vsel %vm760, %v762, %v758
    %v764 = vmul.f32 1.0, %v763
    %v765 = vrcp.pop %v719
    %v766 = vmul.f32 %v719, %v765
    %v767 = vsub.f32 1.0, %v766
    %v768 = vmul.f32 %v765, %v767
    %v769 = vadd.f32 %v765, %v768
    %vm770 = vweird.f32 %v719
    %vm771 = vweird.f32 %v765
    %vm772 = vmor %vm770, %vm771
    %v773 = vsel %vm772, %v765, %v769
    %v774 = vand.u32 2147483647, %v719
    %vm775 = vcmp.eq.f32.partialorder %v774, 8.507059e+37
    %v776 = vand.u32 %v719, 2147483648
    %v777 = vor.u32 1.1754944e-38, %v776
    %v778 = vsel %vm775, %v777, %v773
    %v779 = vmul.f32 1.0, %v778
    %v780 = vtanh.pop %v701
    %v781 = vtanh.pop %v703
    %v784 = vrot.slane %v630, 7
    %v785 = vrot.slane %v631, 7
    %v788 = vmul.f32 %v734, %v784
    %v789 = vmul.f32 %v764, %v785
    %v790 = vmul.f32 %v734, %v780
    %v791 = vmul.f32 %v764, %v781
    %794 = vrot.lane.b32.xlu0 %v790, 64
    %v795 = vpop.permute.xlu0 %794
    %796 = vrot.lane.b32.xlu0 %v791, 64
    %v797 = vpop.permute.xlu0 %796
    %v800 = vadd.f32 %v788, %v795
    %v801 = vadd.f32 %v789, %v797
    %v802 = vtanh.pop %v800
    %v803 = vtanh.pop %v801
    %v804 = vmul.f32 %v749, %v802
    %v805 = vmul.f32 %v779, %v803
    %v808 = vrot.slane %v804, 3
    %v809 = vrot.slane %v805, 3
    %v812 = vadd.f32 %v642, %v808
    %v813 = vadd.f32 %v643, %v809
    %v814 = vrot.slane %v805, 2
    %v815 = vsel %vm307, %v814, %v808
    %816 = vrot.lane.b32.xlu0 %v815, 64
    %v817 = vpop.permute.xlu0 %816
    %v818 = vsel %vm150, %v817, 0
    %820 = vmatpush.msra.mxu0 0.0
    %821 = vmatpush.msra.mxu0 0.0
    %822 = vmatpush.msra.mxu0 0.0
    %823 = vmatpush.msra.mxu0 0.0
    %824 = vmatpush.msra.mxu0 0.0
    %825 = vmatpush.msra.mxu0 0.0
    %826 = vmatpush.msra.mxu0 0.0
    %827 = vmatpush.msra.mxu0 0.0
    %828 = vmatpush.msra.mxu0 %v87
    %829 = vmatpush.msra.mxu0 %v85
    %830 = vmatpush.msra.mxu0 %v83
    %831 = vmatpush.msra.mxu0 %v81
    %832 = vmatpush.msra.mxu0 %v79
    %833 = vmatpush.msra.mxu0 %v77
    %834 = vmatpush.msra.mxu0 %v75
    %835 = vmatpush.msra.mxu0 %v73
    %836 = vmatmul.f32.gmra.mxu0 %v818
    %v837 = vpop.f32.mrf.mxu0
    %v838 = vadd.f32 0.0, %v837
    %839 = vdwg.mxu0
    %840 = vmatpush.msra.mxu0 0.0
    %841 = vmatpush.msra.mxu0 0.0
    %842 = vmatpush.msra.mxu0 0.0
    %843 = vmatpush.msra.mxu0 0.0
    %844 = vmatpush.msra.mxu0 0.0
    %845 = vmatpush.msra.mxu0 0.0
    %846 = vmatpush.msra.mxu0 0.0
    %847 = vmatpush.msra.mxu0 0.0
    %848 = vmatpush.msra.mxu0 %v88
    %849 = vmatpush.msra.mxu0 %v86
    %850 = vmatpush.msra.mxu0 %v84
    %851 = vmatpush.msra.mxu0 %v82
    %852 = vmatpush.msra.mxu0 %v80
    %853 = vmatpush.msra.mxu0 %v78
    %854 = vmatpush.msra.mxu0 %v76
    %855 = vmatpush.msra.mxu0 %v74
    %856 = vmatmul.f32.gmra.mxu0 %v818
    %v857 = vpop.f32.mrf.mxu0
    %v858 = vadd.f32 0.0, %v857
    %859 = vdwg.mxu0
    %v862 = vrot.slane %v838, 4
    %v863 = vrot.slane %v858, 4
    %v864 = vrot.slane %v838, 5
    %v865 = vrot.slane %v858, 5
    %v870 = vadd.f32 %v122, %v862
    %v871 = vadd.f32 %v145, %v863
    %v872 = vadd.f32 %v125, %v864
    %v873 = vadd.f32 %v148, %v865
    %v874 = vxor.u32 %v870, 2147483648
    %v875 = vxor.u32 %v871, 2147483648
    %v876 = vxor.u32 %v872, 2147483648
    %v877 = vxor.u32 %v873, 2147483648
    %v878 = vmul.f32 %v874, 1.442695
    %v879 = vpow.pop %v878
    %v880 = vmul.f32 %v875, 1.442695
    %v881 = vpow.pop %v880
    %v882 = vmul.f32 %v876, 1.442695
    %v883 = vpow.pop %v882
    %v884 = vmul.f32 %v877, 1.442695
    %v885 = vpow.pop %v884
    %v886 = vadd.f32 %v879, 1.0
    %v887 = vadd.f32 %v881, 1.0
    %v888 = vadd.f32 %v883, 1.0
    %v889 = vadd.f32 %v885, 1.0
    %v890 = vrcp.pop %v886
    %v891 = vmul.f32 %v886, %v890
    %v892 = vsub.f32 1.0, %v891
    %v893 = vmul.f32 %v890, %v892
    %v894 = vadd.f32 %v890, %v893
    %vm895 = vweird.f32 %v886
    %vm896 = vweird.f32 %v890
    %vm897 = vmor %vm895, %vm896
    %v898 = vsel %vm897, %v890, %v894
    %v899 = vand.u32 2147483647, %v886
    %vm900 = vcmp.eq.f32.partialorder %v899, 8.507059e+37
    %v901 = vand.u32 %v886, 2147483648
    %v902 = vor.u32 1.1754944e-38, %v901
    %v903 = vsel %vm900, %v902, %v898
    %v904 = vmul.f32 1.0, %v903
    %v905 = vrcp.pop %v887
    %v906 = vmul.f32 %v887, %v905
    %v907 = vsub.f32 1.0, %v906
    %v908 = vmul.f32 %v905, %v907
    %v909 = vadd.f32 %v905, %v908
    %vm910 = vweird.f32 %v887
    %vm911 = vweird.f32 %v905
    %vm912 = vmor %vm910, %vm911
    %v913 = vsel %vm912, %v905, %v909
    %v914 = vand.u32 2147483647, %v887
    %vm915 = vcmp.eq.f32.partialorder %v914, 8.507059e+37
    %v916 = vand.u32 %v887, 2147483648
    %v917 = vor.u32 1.1754944e-38, %v916
    %v918 = vsel %vm915, %v917, %v913
    %v919 = vmul.f32 1.0, %v918
    %v920 = vrcp.pop %v888
    %v921 = vmul.f32 %v888, %v920
    %v922 = vsub.f32 1.0, %v921
    %v923 = vmul.f32 %v920, %v922
    %v924 = vadd.f32 %v920, %v923
    %vm925 = vweird.f32 %v888
    %vm926 = vweird.f32 %v920
    %vm927 = vmor %vm925, %vm926
    %v928 = vsel %vm927, %v920, %v924
    %v929 = vand.u32 2147483647, %v888
    %vm930 = vcmp.eq.f32.partialorder %v929, 8.507059e+37
    %v931 = vand.u32 %v888, 2147483648
    %v932 = vor.u32 1.1754944e-38, %v931
    %v933 = vsel %vm930, %v932, %v928
    %v934 = vmul.f32 1.0, %v933
    %v935 = vrcp.pop %v889
    %v936 = vmul.f32 %v889, %v935
    %v937 = vsub.f32 1.0, %v936
    %v938 = vmul.f32 %v935, %v937
    %v939 = vadd.f32 %v935, %v938
    %vm940 = vweird.f32 %v889
    %vm941 = vweird.f32 %v935
    %vm942 = vmor %vm940, %vm941
    %v943 = vsel %vm942, %v935, %v939
    %v944 = vand.u32 2147483647, %v889
    %vm945 = vcmp.eq.f32.partialorder %v944, 8.507059e+37
    %v946 = vand.u32 %v889, 2147483648
    %v947 = vor.u32 1.1754944e-38, %v946
    %v948 = vsel %vm945, %v947, %v943
    %v949 = vmul.f32 1.0, %v948
    %v950 = vtanh.pop %v871
    %v951 = vtanh.pop %v873
    %v954 = vrot.slane %v800, 7
    %v955 = vrot.slane %v801, 7
    %v958 = vmul.f32 %v904, %v954
    %v959 = vmul.f32 %v934, %v955
    %v960 = vmul.f32 %v904, %v950
    %v961 = vmul.f32 %v934, %v951
    %964 = vrot.lane.b32.xlu0 %v960, 64
    %v965 = vpop.permute.xlu0 %964
    %966 = vrot.lane.b32.xlu0 %v961, 64
    %v967 = vpop.permute.xlu0 %966
    %v970 = vadd.f32 %v958, %v965
    %v971 = vadd.f32 %v959, %v967
    %v972 = vtanh.pop %v970
    %v973 = vtanh.pop %v971
    %v974 = vmul.f32 %v919, %v972
    %v975 = vmul.f32 %v949, %v973
    %v978 = vrot.slane %v974, 4
    %v979 = vrot.slane %v975, 4
    %v982 = vadd.f32 %v812, %v978
    %v983 = vadd.f32 %v813, %v979
    %v984 = vrot.slane %v975, 3
    %v985 = vsel %vm307, %v984, %v978
    %986 = vrot.lane.b32.xlu0 %v985, 64
    %v987 = vpop.permute.xlu0 %986
    %v988 = vsel %vm150, %v987, 0
    %990 = vmatpush.msra.mxu0 0.0
    %991 = vmatpush.msra.mxu0 0.0
    %992 = vmatpush.msra.mxu0 0.0
    %993 = vmatpush.msra.mxu0 0.0
    %994 = vmatpush.msra.mxu0 0.0
    %995 = vmatpush.msra.mxu0 0.0
    %996 = vmatpush.msra.mxu0 0.0
    %997 = vmatpush.msra.mxu0 0.0
    %998 = vmatpush.msra.mxu0 %v87
    %999 = vmatpush.msra.mxu0 %v85
    %1000 = vmatpush.msra.mxu0 %v83
    %1001 = vmatpush.msra.mxu0 %v81
    %1002 = vmatpush.msra.mxu0 %v79
    %1003 = vmatpush.msra.mxu0 %v77
    %1004 = vmatpush.msra.mxu0 %v75
    %1005 = vmatpush.msra.mxu0 %v73
    %1006 = vmatmul.f32.gmra.mxu0 %v988
    %v1007 = vpop.f32.mrf.mxu0
    %v1008 = vadd.f32 0.0, %v1007
    %1009 = vdwg.mxu0
    %1010 = vmatpush.msra.mxu0 0.0
    %1011 = vmatpush.msra.mxu0 0.0
    %1012 = vmatpush.msra.mxu0 0.0
    %1013 = vmatpush.msra.mxu0 0.0
    %1014 = vmatpush.msra.mxu0 0.0
    %1015 = vmatpush.msra.mxu0 0.0
    %1016 = vmatpush.msra.mxu0 0.0
    %1017 = vmatpush.msra.mxu0 0.0
    %1018 = vmatpush.msra.mxu0 %v88
    %1019 = vmatpush.msra.mxu0 %v86
    %1020 = vmatpush.msra.mxu0 %v84
    %1021 = vmatpush.msra.mxu0 %v82
    %1022 = vmatpush.msra.mxu0 %v80
    %1023 = vmatpush.msra.mxu0 %v78
    %1024 = vmatpush.msra.mxu0 %v76
    %1025 = vmatpush.msra.mxu0 %v74
    %1026 = vmatmul.f32.gmra.mxu0 %v988
    %v1027 = vpop.f32.mrf.mxu0
    %v1028 = vadd.f32 0.0, %v1027
    %1029 = vdwg.mxu0
    %v1032 = vrot.slane %v1008, 3
    %v1033 = vrot.slane %v1028, 3
    %v1034 = vrot.slane %v1008, 4
    %v1035 = vrot.slane %v1028, 4
    %v1040 = vadd.f32 %v122, %v1032
    %v1041 = vadd.f32 %v145, %v1033
    %v1042 = vadd.f32 %v125, %v1034
    %v1043 = vadd.f32 %v148, %v1035
    %v1044 = vxor.u32 %v1040, 2147483648
    %v1045 = vxor.u32 %v1041, 2147483648
    %v1046 = vxor.u32 %v1042, 2147483648
    %v1047 = vxor.u32 %v1043, 2147483648
    %v1048 = vmul.f32 %v1044, 1.442695
    %v1049 = vpow.pop %v1048
    %v1050 = vmul.f32 %v1045, 1.442695
    %v1051 = vpow.pop %v1050
    %v1052 = vmul.f32 %v1046, 1.442695
    %v1053 = vpow.pop %v1052
    %v1054 = vmul.f32 %v1047, 1.442695
    %v1055 = vpow.pop %v1054
    %v1056 = vadd.f32 %v1049, 1.0
    %v1057 = vadd.f32 %v1051, 1.0
    %v1058 = vadd.f32 %v1053, 1.0
    %v1059 = vadd.f32 %v1055, 1.0
    %v1060 = vrcp.pop %v1056
    %v1061 = vmul.f32 %v1056, %v1060
    %v1062 = vsub.f32 1.0, %v1061
    %v1063 = vmul.f32 %v1060, %v1062
    %v1064 = vadd.f32 %v1060, %v1063
    %vm1065 = vweird.f32 %v1056
    %vm1066 = vweird.f32 %v1060
    %vm1067 = vmor %vm1065, %vm1066
    %v1068 = vsel %vm1067, %v1060, %v1064
    %v1069 = vand.u32 2147483647, %v1056
    %vm1070 = vcmp.eq.f32.partialorder %v1069, 8.507059e+37
    %v1071 = vand.u32 %v1056, 2147483648
    %v1072 = vor.u32 1.1754944e-38, %v1071
    %v1073 = vsel %vm1070, %v1072, %v1068
    %v1074 = vmul.f32 1.0, %v1073
    %v1075 = vrcp.pop %v1057
    %v1076 = vmul.f32 %v1057, %v1075
    %v1077 = vsub.f32 1.0, %v1076
    %v1078 = vmul.f32 %v1075, %v1077
    %v1079 = vadd.f32 %v1075, %v1078
    %vm1080 = vweird.f32 %v1057
    %vm1081 = vweird.f32 %v1075
    %vm1082 = vmor %vm1080, %vm1081
    %v1083 = vsel %vm1082, %v1075, %v1079
    %v1084 = vand.u32 2147483647, %v1057
    %vm1085 = vcmp.eq.f32.partialorder %v1084, 8.507059e+37
    %v1086 = vand.u32 %v1057, 2147483648
    %v1087 = vor.u32 1.1754944e-38, %v1086
    %v1088 = vsel %vm1085, %v1087, %v1083
    %v1089 = vmul.f32 1.0, %v1088
    %v1090 = vrcp.pop %v1058
    %v1091 = vmul.f32 %v1058, %v1090
    %v1092 = vsub.f32 1.0, %v1091
    %v1093 = vmul.f32 %v1090, %v1092
    %v1094 = vadd.f32 %v1090, %v1093
    %vm1095 = vweird.f32 %v1058
    %vm1096 = vweird.f32 %v1090
    %vm1097 = vmor %vm1095, %vm1096
    %v1098 = vsel %vm1097, %v1090, %v1094
    %v1099 = vand.u32 2147483647, %v1058
    %vm1100 = vcmp.eq.f32.partialorder %v1099, 8.507059e+37
    %v1101 = vand.u32 %v1058, 2147483648
    %v1102 = vor.u32 1.1754944e-38, %v1101
    %v1103 = vsel %vm1100, %v1102, %v1098
    %v1104 = vmul.f32 1.0, %v1103
    %v1105 = vrcp.pop %v1059
    %v1106 = vmul.f32 %v1059, %v1105
    %v1107 = vsub.f32 1.0, %v1106
    %v1108 = vmul.f32 %v1105, %v1107
    %v1109 = vadd.f32 %v1105, %v1108
    %vm1110 = vweird.f32 %v1059
    %vm1111 = vweird.f32 %v1105
    %vm1112 = vmor %vm1110, %vm1111
    %v1113 = vsel %vm1112, %v1105, %v1109
    %v1114 = vand.u32 2147483647, %v1059
    %vm1115 = vcmp.eq.f32.partialorder %v1114, 8.507059e+37
    %v1116 = vand.u32 %v1059, 2147483648
    %v1117 = vor.u32 1.1754944e-38, %v1116
    %v1118 = vsel %vm1115, %v1117, %v1113
    %v1119 = vmul.f32 1.0, %v1118
    %v1120 = vtanh.pop %v1041
    %v1121 = vtanh.pop %v1043
    %v1124 = vrot.slane %v970, 7
    %v1125 = vrot.slane %v971, 7
    %v1128 = vmul.f32 %v1074, %v1124
    %v1129 = vmul.f32 %v1104, %v1125
    %v1130 = vmul.f32 %v1074, %v1120
    %v1131 = vmul.f32 %v1104, %v1121
    %1134 = vrot.lane.b32.xlu0 %v1130, 64
    %v1135 = vpop.permute.xlu0 %1134
    %1136 = vrot.lane.b32.xlu0 %v1131, 64
    %v1137 = vpop.permute.xlu0 %1136
    %v1140 = vadd.f32 %v1128, %v1135
    %v1141 = vadd.f32 %v1129, %v1137
    %v1142 = vtanh.pop %v1140
    %v1143 = vtanh.pop %v1141
    %v1144 = vmul.f32 %v1089, %v1142
    %v1145 = vmul.f32 %v1119, %v1143
    %v1148 = vrot.slane %v1144, 5
    %v1149 = vrot.slane %v1145, 5
    %v1152 = vadd.f32 %v982, %v1148
    %v1153 = vadd.f32 %v983, %v1149
    %v1154 = vrot.slane %v1145, 4
    %v1155 = vsel %vm307, %v1154, %v1148
    %1156 = vrot.lane.b32.xlu0 %v1155, 64
    %v1157 = vpop.permute.xlu0 %1156
    %v1158 = vsel %vm150, %v1157, 0
    %1160 = vmatpush.msra.mxu0 0.0
    %1161 = vmatpush.msra.mxu0 0.0
    %1162 = vmatpush.msra.mxu0 0.0
    %1163 = vmatpush.msra.mxu0 0.0
    %1164 = vmatpush.msra.mxu0 0.0
    %1165 = vmatpush.msra.mxu0 0.0
    %1166 = vmatpush.msra.mxu0 0.0
    %1167 = vmatpush.msra.mxu0 0.0
    %1168 = vmatpush.msra.mxu0 %v87
    %1169 = vmatpush.msra.mxu0 %v85
    %1170 = vmatpush.msra.mxu0 %v83
    %1171 = vmatpush.msra.mxu0 %v81
    %1172 = vmatpush.msra.mxu0 %v79
    %1173 = vmatpush.msra.mxu0 %v77
    %1174 = vmatpush.msra.mxu0 %v75
    %1175 = vmatpush.msra.mxu0 %v73
    %1176 = vmatmul.f32.gmra.mxu0 %v1158
    %v1177 = vpop.f32.mrf.mxu0
    %v1178 = vadd.f32 0.0, %v1177
    %1179 = vdwg.mxu0
    %1180 = vmatpush.msra.mxu0 0.0
    %1181 = vmatpush.msra.mxu0 0.0
    %1182 = vmatpush.msra.mxu0 0.0
    %1183 = vmatpush.msra.mxu0 0.0
    %1184 = vmatpush.msra.mxu0 0.0
    %1185 = vmatpush.msra.mxu0 0.0
    %1186 = vmatpush.msra.mxu0 0.0
    %1187 = vmatpush.msra.mxu0 0.0
    %1188 = vmatpush.msra.mxu0 %v88
    %1189 = vmatpush.msra.mxu0 %v86
    %1190 = vmatpush.msra.mxu0 %v84
    %1191 = vmatpush.msra.mxu0 %v82
    %1192 = vmatpush.msra.mxu0 %v80
    %1193 = vmatpush.msra.mxu0 %v78
    %1194 = vmatpush.msra.mxu0 %v76
    %1195 = vmatpush.msra.mxu0 %v74
    %1196 = vmatmul.f32.gmra.mxu0 %v1158
    %v1197 = vpop.f32.mrf.mxu0
    %v1198 = vadd.f32 0.0, %v1197
    %1199 = vdwg.mxu0
    %v1202 = vrot.slane %v1178, 2
    %v1203 = vrot.slane %v1198, 2
    %v1204 = vrot.slane %v1178, 3
    %v1205 = vrot.slane %v1198, 3
    %v1210 = vadd.f32 %v122, %v1202
    %v1211 = vadd.f32 %v145, %v1203
    %v1212 = vadd.f32 %v125, %v1204
    %v1213 = vadd.f32 %v148, %v1205
    %v1214 = vxor.u32 %v1210, 2147483648
    %v1215 = vxor.u32 %v1211, 2147483648
    %v1216 = vxor.u32 %v1212, 2147483648
    %v1217 = vxor.u32 %v1213, 2147483648
    %v1218 = vmul.f32 %v1214, 1.442695
    %v1219 = vpow.pop %v1218
    %v1220 = vmul.f32 %v1215, 1.442695
    %v1221 = vpow.pop %v1220
    %v1222 = vmul.f32 %v1216, 1.442695
    %v1223 = vpow.pop %v1222
    %v1224 = vmul.f32 %v1217, 1.442695
    %v1225 = vpow.pop %v1224
    %v1226 = vadd.f32 %v1219, 1.0
    %v1227 = vadd.f32 %v1221, 1.0
    %v1228 = vadd.f32 %v1223, 1.0
    %v1229 = vadd.f32 %v1225, 1.0
    %v1230 = vrcp.pop %v1226
    %v1231 = vmul.f32 %v1226, %v1230
    %v1232 = vsub.f32 1.0, %v1231
    %v1233 = vmul.f32 %v1230, %v1232
    %v1234 = vadd.f32 %v1230, %v1233
    %vm1235 = vweird.f32 %v1226
    %vm1236 = vweird.f32 %v1230
    %vm1237 = vmor %vm1235, %vm1236
    %v1238 = vsel %vm1237, %v1230, %v1234
    %v1239 = vand.u32 2147483647, %v1226
    %vm1240 = vcmp.eq.f32.partialorder %v1239, 8.507059e+37
    %v1241 = vand.u32 %v1226, 2147483648
    %v1242 = vor.u32 1.1754944e-38, %v1241
    %v1243 = vsel %vm1240, %v1242, %v1238
    %v1244 = vmul.f32 1.0, %v1243
    %v1245 = vrcp.pop %v1227
    %v1246 = vmul.f32 %v1227, %v1245
    %v1247 = vsub.f32 1.0, %v1246
    %v1248 = vmul.f32 %v1245, %v1247
    %v1249 = vadd.f32 %v1245, %v1248
    %vm1250 = vweird.f32 %v1227
    %vm1251 = vweird.f32 %v1245
    %vm1252 = vmor %vm1250, %vm1251
    %v1253 = vsel %vm1252, %v1245, %v1249
    %v1254 = vand.u32 2147483647, %v1227
    %vm1255 = vcmp.eq.f32.partialorder %v1254, 8.507059e+37
    %v1256 = vand.u32 %v1227, 2147483648
    %v1257 = vor.u32 1.1754944e-38, %v1256
    %v1258 = vsel %vm1255, %v1257, %v1253
    %v1259 = vmul.f32 1.0, %v1258
    %v1260 = vrcp.pop %v1228
    %v1261 = vmul.f32 %v1228, %v1260
    %v1262 = vsub.f32 1.0, %v1261
    %v1263 = vmul.f32 %v1260, %v1262
    %v1264 = vadd.f32 %v1260, %v1263
    %vm1265 = vweird.f32 %v1228
    %vm1266 = vweird.f32 %v1260
    %vm1267 = vmor %vm1265, %vm1266
    %v1268 = vsel %vm1267, %v1260, %v1264
    %v1269 = vand.u32 2147483647, %v1228
    %vm1270 = vcmp.eq.f32.partialorder %v1269, 8.507059e+37
    %v1271 = vand.u32 %v1228, 2147483648
    %v1272 = vor.u32 1.1754944e-38, %v1271
    %v1273 = vsel %vm1270, %v1272, %v1268
    %v1274 = vmul.f32 1.0, %v1273
    %v1275 = vrcp.pop %v1229
    %v1276 = vmul.f32 %v1229, %v1275
    %v1277 = vsub.f32 1.0, %v1276
    %v1278 = vmul.f32 %v1275, %v1277
    %v1279 = vadd.f32 %v1275, %v1278
    %vm1280 = vweird.f32 %v1229
    %vm1281 = vweird.f32 %v1275
    %vm1282 = vmor %vm1280, %vm1281
    %v1283 = vsel %vm1282, %v1275, %v1279
    %v1284 = vand.u32 2147483647, %v1229
    %vm1285 = vcmp.eq.f32.partialorder %v1284, 8.507059e+37
    %v1286 = vand.u32 %v1229, 2147483648
    %v1287 = vor.u32 1.1754944e-38, %v1286
    %v1288 = vsel %vm1285, %v1287, %v1283
    %v1289 = vmul.f32 1.0, %v1288
    %v1290 = vtanh.pop %v1211
    %v1291 = vtanh.pop %v1213
    %v1294 = vrot.slane %v1140, 7
    %v1295 = vrot.slane %v1141, 7
    %v1298 = vmul.f32 %v1244, %v1294
    %v1299 = vmul.f32 %v1274, %v1295
    %v1300 = vmul.f32 %v1244, %v1290
    %v1301 = vmul.f32 %v1274, %v1291
    %1304 = vrot.lane.b32.xlu0 %v1300, 64
    %v1305 = vpop.permute.xlu0 %1304
    %1306 = vrot.lane.b32.xlu0 %v1301, 64
    %v1307 = vpop.permute.xlu0 %1306
    %v1310 = vadd.f32 %v1298, %v1305
    %v1311 = vadd.f32 %v1299, %v1307
    %v1312 = vtanh.pop %v1310
    %v1313 = vtanh.pop %v1311
    %v1314 = vmul.f32 %v1259, %v1312
    %v1315 = vmul.f32 %v1289, %v1313
    %v1318 = vrot.slane %v1314, 6
    %v1319 = vrot.slane %v1315, 6
    %v1322 = vadd.f32 %v1152, %v1318
    %v1323 = vadd.f32 %v1153, %v1319
    %v1324 = vrot.slane %v1315, 5
    %v1325 = vsel %vm307, %v1324, %v1318
    %1326 = vrot.lane.b32.xlu0 %v1325, 64
    %v1327 = vpop.permute.xlu0 %1326
    %v1328 = vsel %vm150, %v1327, 0
    %1330 = vmatpush.msra.mxu0 0.0
    %1331 = vmatpush.msra.mxu0 0.0
    %1332 = vmatpush.msra.mxu0 0.0
    %1333 = vmatpush.msra.mxu0 0.0
    %1334 = vmatpush.msra.mxu0 0.0
    %1335 = vmatpush.msra.mxu0 0.0
    %1336 = vmatpush.msra.mxu0 0.0
    %1337 = vmatpush.msra.mxu0 0.0
    %1338 = vmatpush.msra.mxu0 %v87
    %1339 = vmatpush.msra.mxu0 %v85
    %1340 = vmatpush.msra.mxu0 %v83
    %1341 = vmatpush.msra.mxu0 %v81
    %1342 = vmatpush.msra.mxu0 %v79
    %1343 = vmatpush.msra.mxu0 %v77
    %1344 = vmatpush.msra.mxu0 %v75
    %1345 = vmatpush.msra.mxu0 %v73
    %1346 = vmatmul.f32.gmra.mxu0 %v1328
    %v1347 = vpop.f32.mrf.mxu0
    %v1348 = vadd.f32 0.0, %v1347
    %1349 = vdwg.mxu0
    %1350 = vmatpush.msra.mxu0 0.0
    %1351 = vmatpush.msra.mxu0 0.0
    %1352 = vmatpush.msra.mxu0 0.0
    %1353 = vmatpush.msra.mxu0 0.0
    %1354 = vmatpush.msra.mxu0 0.0
    %1355 = vmatpush.msra.mxu0 0.0
    %1356 = vmatpush.msra.mxu0 0.0
    %1357 = vmatpush.msra.mxu0 0.0
    %1358 = vmatpush.msra.mxu0 %v88
    %1359 = vmatpush.msra.mxu0 %v86
    %1360 = vmatpush.msra.mxu0 %v84
    %1361 = vmatpush.msra.mxu0 %v82
    %1362 = vmatpush.msra.mxu0 %v80
    %1363 = vmatpush.msra.mxu0 %v78
    %1364 = vmatpush.msra.mxu0 %v76
    %1365 = vmatpush.msra.mxu0 %v74
    %1366 = vmatmul.f32.gmra.mxu0 %v1328
    %v1367 = vpop.f32.mrf.mxu0
    %v1368 = vadd.f32 0.0, %v1367
    %1369 = vdwg.mxu0
    %v1372 = vrot.slane %v1348, 1
    %v1373 = vrot.slane %v1368, 1
    %v1374 = vrot.slane %v1348, 2
    %v1375 = vrot.slane %v1368, 2
    %v1380 = vadd.f32 %v122, %v1372
    %v1381 = vadd.f32 %v145, %v1373
    %v1382 = vadd.f32 %v125, %v1374
    %v1383 = vadd.f32 %v148, %v1375
    %v1384 = vxor.u32 %v1380, 2147483648
    %v1385 = vxor.u32 %v1381, 2147483648
    %v1386 = vxor.u32 %v1382, 2147483648
    %v1387 = vxor.u32 %v1383, 2147483648
    %v1388 = vmul.f32 %v1384, 1.442695
    %v1389 = vpow.pop %v1388
    %v1390 = vmul.f32 %v1385, 1.442695
    %v1391 = vpow.pop %v1390
    %v1392 = vmul.f32 %v1386, 1.442695
    %v1393 = vpow.pop %v1392
    %v1394 = vmul.f32 %v1387, 1.442695
    %v1395 = vpow.pop %v1394
    %v1396 = vadd.f32 %v1389, 1.0
    %v1397 = vadd.f32 %v1391, 1.0
    %v1398 = vadd.f32 %v1393, 1.0
    %v1399 = vadd.f32 %v1395, 1.0
    %v1400 = vrcp.pop %v1396
    %v1401 = vmul.f32 %v1396, %v1400
    %v1402 = vsub.f32 1.0, %v1401
    %v1403 = vmul.f32 %v1400, %v1402
    %v1404 = vadd.f32 %v1400, %v1403
    %vm1405 = vweird.f32 %v1396
    %vm1406 = vweird.f32 %v1400
    %vm1407 = vmor %vm1405, %vm1406
    %v1408 = vsel %vm1407, %v1400, %v1404
    %v1409 = vand.u32 2147483647, %v1396
    %vm1410 = vcmp.eq.f32.partialorder %v1409, 8.507059e+37
    %v1411 = vand.u32 %v1396, 2147483648
    %v1412 = vor.u32 1.1754944e-38, %v1411
    %v1413 = vsel %vm1410, %v1412, %v1408
    %v1414 = vmul.f32 1.0, %v1413
    %v1415 = vrcp.pop %v1397
    %v1416 = vmul.f32 %v1397, %v1415
    %v1417 = vsub.f32 1.0, %v1416
    %v1418 = vmul.f32 %v1415, %v1417
    %v1419 = vadd.f32 %v1415, %v1418
    %vm1420 = vweird.f32 %v1397
    %vm1421 = vweird.f32 %v1415
    %vm1422 = vmor %vm1420, %vm1421
    %v1423 = vsel %vm1422, %v1415, %v1419
    %v1424 = vand.u32 2147483647, %v1397
    %vm1425 = vcmp.eq.f32.partialorder %v1424, 8.507059e+37
    %v1426 = vand.u32 %v1397, 2147483648
    %v1427 = vor.u32 1.1754944e-38, %v1426
    %v1428 = vsel %vm1425, %v1427, %v1423
    %v1429 = vmul.f32 1.0, %v1428
    %v1430 = vrcp.pop %v1398
    %v1431 = vmul.f32 %v1398, %v1430
    %v1432 = vsub.f32 1.0, %v1431
    %v1433 = vmul.f32 %v1430, %v1432
    %v1434 = vadd.f32 %v1430, %v1433
    %vm1435 = vweird.f32 %v1398
    %vm1436 = vweird.f32 %v1430
    %vm1437 = vmor %vm1435, %vm1436
    %v1438 = vsel %vm1437, %v1430, %v1434
    %v1439 = vand.u32 2147483647, %v1398
    %vm1440 = vcmp.eq.f32.partialorder %v1439, 8.507059e+37
    %v1441 = vand.u32 %v1398, 2147483648
    %v1442 = vor.u32 1.1754944e-38, %v1441
    %v1443 = vsel %vm1440, %v1442, %v1438
    %v1444 = vmul.f32 1.0, %v1443
    %v1445 = vrcp.pop %v1399
    %v1446 = vmul.f32 %v1399, %v1445
    %v1447 = vsub.f32 1.0, %v1446
    %v1448 = vmul.f32 %v1445, %v1447
    %v1449 = vadd.f32 %v1445, %v1448
    %vm1450 = vweird.f32 %v1399
    %vm1451 = vweird.f32 %v1445
    %vm1452 = vmor %vm1450, %vm1451
    %v1453 = vsel %vm1452, %v1445, %v1449
    %v1454 = vand.u32 2147483647, %v1399
    %vm1455 = vcmp.eq.f32.partialorder %v1454, 8.507059e+37
    %v1456 = vand.u32 %v1399, 2147483648
    %v1457 = vor.u32 1.1754944e-38, %v1456
    %v1458 = vsel %vm1455, %v1457, %v1453
    %v1459 = vmul.f32 1.0, %v1458
    %v1460 = vtanh.pop %v1381
    %v1461 = vtanh.pop %v1383
    %v1464 = vrot.slane %v1310, 7
    %v1465 = vrot.slane %v1311, 7
    %v1468 = vmul.f32 %v1414, %v1464
    %v1469 = vmul.f32 %v1444, %v1465
    %v1470 = vmul.f32 %v1414, %v1460
    %v1471 = vmul.f32 %v1444, %v1461
    %1474 = vrot.lane.b32.xlu0 %v1470, 64
    %v1475 = vpop.permute.xlu0 %1474
    %1476 = vrot.lane.b32.xlu0 %v1471, 64
    %v1477 = vpop.permute.xlu0 %1476
    %v1480 = vadd.f32 %v1468, %v1475
    %v1481 = vadd.f32 %v1469, %v1477
    %v1482 = vtanh.pop %v1480
    %v1483 = vtanh.pop %v1481
    %v1484 = vmul.f32 %v1429, %v1482
    %v1485 = vmul.f32 %v1459, %v1483
    %v1488 = vrot.slane %v1484, 7
    %v1489 = vrot.slane %v1485, 7
    %v1492 = vadd.f32 %v1322, %v1488
    %v1493 = vadd.f32 %v1323, %v1489
    %v1496 = vrot.slane %v1493, 7
    %v1497 = vsel %vm307, %v1496, %v1492
    %1498 = vrot.lane.b32.xlu0 %v1497, 64
    %v1499 = vpop.permute.xlu0 %1498
    %vm1501 = vcmask 517120
    %1502 = vst.msk [vmem:[#allocation8] sm:$0x3] %vm1501, %v1499
    // Predicated region
    $region30: #{tpu_custom_call.1} parent=1 // pred_check
      _
    $region31: #{tpu_custom_call.1} parent=1 // pred_check_branch
      %1504 = sbr.rel (0) target = $region33
    $region32: #{tpu_custom_call.1} parent=1 // pred_region
      %1506 = vsyncadd [#allocation4], 0
      %s1508 = sshll.u32 [#allocation8], 4
      %s1509 = int_to_ptr.vmem [resolvable:$true] %s1508
      %s1510 = sshll.u32 %s4, 4
      %s1511 = int_to_ptr.hbm [resolvable:$true] %s1510
      %1513 = dma.vmem_to_hbm [thread:$0]  %s1509, 32, %s1511, [#allocation4]
    $region33: #{tpu_custom_call.1} parent=1 // pred_fallthru
      _
    // Predicated region
    $region34: #{tpu_custom_call.1} parent=1 // pred_check
      _
    $region35: #{tpu_custom_call.1} parent=1 // pred_check_branch
      %1515 = sbr.rel (0) target = $region37
    $region36: #{tpu_custom_call.1} parent=1 // pred_region
      %1517 = dma.done [#allocation4], 32
    $region37: #{tpu_custom_call.1} parent=1 // pred_fallthru
      _
    %1518 = vsyncpa [#allocation3], 1
    %1519 = vsyncpa [#allocation6], 1
    %1520 = vsyncpa [#allocation4], 1

</llo_original>
